<compile_context>
chip_gen: v7x
topology: tpu7x:2x2x1
jax: 0.10.0
libtpu: 0.0.40
codegen_flags: <defaults>
</compile_context>

<pallas_src>
import jax
import jax.numpy as jnp
from jax import lax
from jax.experimental import pallas as pl
from jax.experimental.pallas import tpu as pltpu

# ---------------- model hyper-params (small, consistent with the module) ----
BATCH = 2
SEQ_LEN = 16          # module default 297; small for the demo
VOCAB = 21            # module default
HIDDEN = 32           # module default 128; small for the demo
NUM_LAYERS = 3
VOCAB_PAD = 128       # lane-dense output width (sliced back to VOCAB outside)

_PREC = lax.Precision.DEFAULT   # review: demote from HIGHEST; bf16-in/f32-acc at real size


def _dot(a, b):
    return jnp.dot(a, b, preferred_element_type=jnp.float32, precision=_PREC)


# ---------------------------- Pallas kernel ---------------------------------
def _make_kernel(seq_len: int, num_layers: int):
    def kernel(y_ref, w_emb_ref, b_emb_ref, pos_ref,
               w_k0_ref, w_k1_ref, w_k2_ref, b_conv_ref,
               w_out_ref, b_out_ref, out_ref):
        # Embedding + bias + positional encoding for this sequence block.
        h = _dot(y_ref[...], w_emb_ref[...]) + b_emb_ref[...] + pos_ref[...]   # (S, H)

        # Boundary masks, hoisted out of the (unrolled) layer loop.
        row = lax.broadcasted_iota(jnp.int32, (seq_len, 1), 0)
        mask_prev = (row != 0).astype(jnp.float32)             # zero at sequence start
        mask_next = (row != seq_len - 1).astype(jnp.float32)   # zero at sequence end

        # Conv1d(k=3, padding=1) + ReLU, three accumulated per-tap dots per layer.
        for l in range(num_layers):
            # Neighbour rows via XLU rolls; wrapped rows zeroed by the masks.
            h_prev = pltpu.roll(h, 1, axis=0) * mask_prev              # h[i-1]
            h_next = pltpu.roll(h, seq_len - 1, axis=0) * mask_next    # h[i+1]
            acc = (_dot(h_prev, w_k0_ref[l]) + _dot(h, w_k1_ref[l])
                   + _dot(h_next, w_k2_ref[l]) + b_conv_ref[l])        # (S, H)
            h = jnp.maximum(acc, 0.0)                                  # ReLU

        # Output projection into the lane-padded (S, 128) tile.
        out_ref[...] = _dot(h, w_out_ref[...]) + b_out_ref[...]
    return kernel


def denoising_network(y, params):
    B, S, V = y.shape
    H = params["w_emb_t"].shape[1]
    L = params["w_conv"].shape[0]
    VP = VOCAB_PAD

    # Per-tap conv weights, (L, H, H) each (tap order: [i-1], [i], [i+1]).
    w_k0 = params["w_conv"][:, 0]
    w_k1 = params["w_conv"][:, 1]
    w_k2 = params["w_conv"][:, 2]
    # Lane-pad output projection V -> 128 with zero columns.
    w_out_p = jnp.zeros((H, VP), jnp.float32).at[:, :V].set(params["w_out_t"])
    b_out_p = jnp.zeros((1, VP), jnp.float32).at[:, :V].set(params["b_out"])

    const2 = lambda b: (0, 0)       # weights / biases: VMEM-resident across grid steps
    const3 = lambda b: (0, 0, 0)

    out_padded = pl.pallas_call(
        _make_kernel(S, L),
        out_shape=jax.ShapeDtypeStruct((B * S, VP), jnp.float32),
        grid_spec=pltpu.PrefetchScalarGridSpec(
            num_scalar_prefetch=0,
            grid=(B,),                                       # one sequence per grid step
            in_specs=[
                pl.BlockSpec((S, V), lambda b: (b, 0)),      # y     (streamed per step)
                pl.BlockSpec((V, H), const2),                # w_emb (resident)
                pl.BlockSpec((1, H), const2),                # b_emb (resident)
                pl.BlockSpec((S, H), const2),                # pos   (resident)
                pl.BlockSpec((L, H, H), const3),             # conv tap 0 weights
                pl.BlockSpec((L, H, H), const3),             # conv tap 1 weights
                pl.BlockSpec((L, H, H), const3),             # conv tap 2 weights
                pl.BlockSpec((L, 1, H), const3),             # conv biases
                pl.BlockSpec((H, VP), const2),               # output weight (lane-padded)
                pl.BlockSpec((1, VP), const2),               # output bias   (lane-padded)
            ],
            out_specs=pl.BlockSpec((S, VP), lambda b: (b, 0)),
        ),
        compiler_params=pltpu.CompilerParams(
            dimension_semantics=("parallel",)),              # v7x: batch across both TCs
    )(y.reshape(B * S, V), params["w_emb_t"], params["b_emb"], params["pos"],
      w_k0, w_k1, w_k2, params["b_conv"], w_out_p, b_out_p)

    return out_padded[:, :V].reshape(B, S, V)


# ------------------------- pure-JAX reference -------------------------------
def reference(y, params):
    h = (jnp.matmul(y, params["w_emb_t"], precision=_PREC)
         + params["b_emb"] + params["pos"][None])
    for l in range(NUM_LAYERS):
        h_pad = jnp.pad(h, ((0, 0), (1, 1), (0, 0)))
        out = (jnp.matmul(h_pad[:, :-2], params["w_conv"][l, 0], precision=_PREC)
               + jnp.matmul(h_pad[:, 1:-1], params["w_conv"][l, 1], precision=_PREC)
               + jnp.matmul(h_pad[:, 2:], params["w_conv"][l, 2], precision=_PREC)
               + params["b_conv"][l])
        h = jax.nn.relu(out)
    return jnp.matmul(h, params["w_out_t"], precision=_PREC) + params["b_out"]


# ------------------------- deterministic params -----------------------------
def init_params(key, vocab=VOCAB, hidden=HIDDEN, seq_len=SEQ_LEN, layers=NUM_LAYERS):
    ks = jax.random.split(key, 8)
    scale = 0.1
    # Linear(vocab -> hidden): PyTorch W is (H, V); store transposed (V, H).
    w_emb_t = scale * jax.random.normal(ks[0], (vocab, hidden), jnp.float32)
    b_emb = scale * jax.random.normal(ks[1], (1, hidden), jnp.float32)
    pos = jax.random.normal(ks[2], (seq_len, hidden), jnp.float32)
    # Conv1d weights: PyTorch (C_out, C_in, 3); store per-tap transposed:
    # w_conv[l, k] has shape (C_in, C_out) so conv = sum_k shift_k(x) @ w_conv[l, k].
    w_conv = scale * jax.random.normal(ks[3], (layers, 3, hidden, hidden), jnp.float32)
    b_conv = scale * jax.random.normal(ks[4], (layers, 1, hidden), jnp.float32)
    # Linear(hidden -> vocab): PyTorch W is (V, H); store transposed (H, V).
    w_out_t = scale * jax.random.normal(ks[5], (hidden, vocab), jnp.float32)
    b_out = scale * jax.random.normal(ks[6], (1, vocab), jnp.float32)
    return dict(w_emb_t=w_emb_t, b_emb=b_emb, pos=pos,
                w_conv=w_conv, b_conv=b_conv, w_out_t=w_out_t, b_out=b_out)


if __name__ == "__main__":
    key = jax.random.PRNGKey(0)
    k_param, k_in = jax.random.split(key)
    params = init_params(k_param)
    # Input (batch, seq_len, vocab) — e.g. soft / noisy one-hot sequences.
    y = jax.random.uniform(k_in, (BATCH, SEQ_LEN, VOCAB), jnp.float32)

    out = denoising_network(y, params)
    out = jax.block_until_ready(out)

    ref = reference(y, params)
    assert out.shape == (BATCH, SEQ_LEN, VOCAB), out.shape
    # Kernel and reference use the same (DEFAULT) matmul precision, so parity
    # stays tight even though operands may be bf16-rounded on the MXU.
    assert jnp.allclose(out, ref, rtol=1e-3, atol=1e-3), \
        float(jnp.max(jnp.abs(out - ref)))
    print("KERNEL_OK")
</pallas_src>

<mosaic_0001>
module attributes {stable_mosaic.version = 11 : i64} {
  func.func @kernel(%arg0: i32, %arg1: memref<16x21xf32, #tpu.memory_space<vmem>>, %arg2: memref<21x32xf32, #tpu.memory_space<vmem>>, %arg3: memref<1x32xf32, #tpu.memory_space<vmem>>, %arg4: memref<16x32xf32, #tpu.memory_space<vmem>>, %arg5: memref<3x32x32xf32, #tpu.memory_space<vmem>>, %arg6: memref<3x32x32xf32, #tpu.memory_space<vmem>>, %arg7: memref<3x32x32xf32, #tpu.memory_space<vmem>>, %arg8: memref<3x1x32xf32, #tpu.memory_space<vmem>>, %arg9: memref<32x128xf32, #tpu.memory_space<vmem>>, %arg10: memref<1x128xf32, #tpu.memory_space<vmem>>, %arg11: memref<16x128xf32, #tpu.memory_space<vmem>>) attributes {dimension_semantics = [#tpu.dimension_semantics<parallel>], iteration_bounds = array<i64: 2>, scalar_prefetch = 0 : i64, scratch_operands = 0 : i64, tpu.core_type = #tpu.core_type<tc>, window_params = [{transform_indices = @transform_0, window_bounds = array<i64: 16, 21>}, {pipeline_mode = #tpu.pipeline_mode<synchronous>, transform_indices = @transform_1, window_bounds = array<i64: 21, 32>}, {pipeline_mode = #tpu.pipeline_mode<synchronous>, transform_indices = @transform_2, window_bounds = array<i64: 1, 32>}, {pipeline_mode = #tpu.pipeline_mode<synchronous>, transform_indices = @transform_3, window_bounds = array<i64: 16, 32>}, {pipeline_mode = #tpu.pipeline_mode<synchronous>, transform_indices = @transform_4, window_bounds = array<i64: 3, 32, 32>}, {pipeline_mode = #tpu.pipeline_mode<synchronous>, transform_indices = @transform_5, window_bounds = array<i64: 3, 32, 32>}, {pipeline_mode = #tpu.pipeline_mode<synchronous>, transform_indices = @transform_6, window_bounds = array<i64: 3, 32, 32>}, {pipeline_mode = #tpu.pipeline_mode<synchronous>, transform_indices = @transform_7, window_bounds = array<i64: 3, 1, 32>}, {pipeline_mode = #tpu.pipeline_mode<synchronous>, transform_indices = @transform_8, window_bounds = array<i64: 32, 128>}, {pipeline_mode = #tpu.pipeline_mode<synchronous>, transform_indices = @transform_9, window_bounds = array<i64: 1, 128>}, {transform_indices = @transform_10, window_bounds = array<i64: 16, 128>}]} {
    %c0 = arith.constant 0 : index
    %c0_0 = arith.constant 0 : index
    %0 = vector.load %arg1[%c0, %c0_0] : memref<16x21xf32, #tpu.memory_space<vmem>>, vector<16x21xf32>
    %c0_1 = arith.constant 0 : index
    %c0_2 = arith.constant 0 : index
    %1 = vector.load %arg2[%c0_1, %c0_2] : memref<21x32xf32, #tpu.memory_space<vmem>>, vector<21x32xf32>
    %cst = arith.constant dense<0.000000e+00> : vector<16x32xf32>
    %2 = tpu.matmul %0, %1, %cst {dimension_numbers = #tpu.dot_dimension_numbers<[1], [0], [0], [1], [0, 0, 1, 1], [], []>} : vector<16x21xf32>, vector<21x32xf32>, vector<16x32xf32> -> vector<16x32xf32>
    %c0_3 = arith.constant 0 : index
    %c0_4 = arith.constant 0 : index
    %3 = vector.load %arg3[%c0_3, %c0_4] : memref<1x32xf32, #tpu.memory_space<vmem>>, vector<1x32xf32>
    %4 = vector.broadcast %3 : vector<1x32xf32> to vector<16x32xf32>
    %5 = arith.addf %2, %4 : vector<16x32xf32>
    %c0_5 = arith.constant 0 : index
    %c0_6 = arith.constant 0 : index
    %6 = vector.load %arg4[%c0_5, %c0_6] : memref<16x32xf32, #tpu.memory_space<vmem>>, vector<16x32xf32>
    %7 = arith.addf %5, %6 : vector<16x32xf32>
    %8 = tpu.iota {dimensions = array<i32: 0>} : vector<16x1xi32>
    %c0_i32 = arith.constant 0 : i32
    %9 = vector.broadcast %c0_i32 : i32 to vector<16x1xi32>
    %10 = arith.cmpi ne, %8, %9 : vector<16x1xi32>
    %11 = arith.extui %10 : vector<16x1xi1> to vector<16x1xi32>
    %12 = arith.sitofp %11 : vector<16x1xi32> to vector<16x1xf32>
    %c15_i32 = arith.constant 15 : i32
    %13 = vector.broadcast %c15_i32 : i32 to vector<16x1xi32>
    %14 = arith.cmpi ne, %8, %13 : vector<16x1xi32>
    %15 = arith.extui %14 : vector<16x1xi1> to vector<16x1xi32>
    %16 = arith.sitofp %15 : vector<16x1xi32> to vector<16x1xf32>
    %c1_i32 = arith.constant 1 : i32
    %17 = tpu.dynamic_rotate %7 by %c1_i32 dim 0 : vector<16x32xf32>, i32 -> vector<16x32xf32>
    %18 = vector.broadcast %12 : vector<16x1xf32> to vector<16x32xf32>
    %19 = arith.mulf %17, %18 : vector<16x32xf32>
    %c15_i32_7 = arith.constant 15 : i32
    %20 = tpu.dynamic_rotate %7 by %c15_i32_7 dim 0 : vector<16x32xf32>, i32 -> vector<16x32xf32>
    %21 = vector.broadcast %16 : vector<16x1xf32> to vector<16x32xf32>
    %22 = arith.mulf %20, %21 : vector<16x32xf32>
    %c0_8 = arith.constant 0 : index
    %c0_9 = arith.constant 0 : index
    %c0_10 = arith.constant 0 : index
    %23 = vector.load %arg5[%c0_8, %c0_9, %c0_10] : memref<3x32x32xf32, #tpu.memory_space<vmem>>, vector<1x32x32xf32>
    %24 = vector.shape_cast %23 : vector<1x32x32xf32> to vector<32x32xf32>
    %cst_11 = arith.constant dense<0.000000e+00> : vector<16x32xf32>
    %25 = tpu.matmul %19, %24, %cst_11 {dimension_numbers = #tpu.dot_dimension_numbers<[1], [0], [0], [1], [0, 0, 1, 1], [], []>} : vector<16x32xf32>, vector<32x32xf32>, vector<16x32xf32> -> vector<16x32xf32>
    %c0_12 = arith.constant 0 : index
    %c0_13 = arith.constant 0 : index
    %c0_14 = arith.constant 0 : index
    %26 = vector.load %arg6[%c0_12, %c0_13, %c0_14] : memref<3x32x32xf32, #tpu.memory_space<vmem>>, vector<1x32x32xf32>
    %27 = vector.shape_cast %26 : vector<1x32x32xf32> to vector<32x32xf32>
    %cst_15 = arith.constant dense<0.000000e+00> : vector<16x32xf32>
    %28 = tpu.matmul %7, %27, %cst_15 {dimension_numbers = #tpu.dot_dimension_numbers<[1], [0], [0], [1], [0, 0, 1, 1], [], []>} : vector<16x32xf32>, vector<32x32xf32>, vector<16x32xf32> -> vector<16x32xf32>
    %29 = arith.addf %25, %28 : vector<16x32xf32>
    %c0_16 = arith.constant 0 : index
    %c0_17 = arith.constant 0 : index
    %c0_18 = arith.constant 0 : index
    %30 = vector.load %arg7[%c0_16, %c0_17, %c0_18] : memref<3x32x32xf32, #tpu.memory_space<vmem>>, vector<1x32x32xf32>
    %31 = vector.shape_cast %30 : vector<1x32x32xf32> to vector<32x32xf32>
    %cst_19 = arith.constant dense<0.000000e+00> : vector<16x32xf32>
    %32 = tpu.matmul %22, %31, %cst_19 {dimension_numbers = #tpu.dot_dimension_numbers<[1], [0], [0], [1], [0, 0, 1, 1], [], []>} : vector<16x32xf32>, vector<32x32xf32>, vector<16x32xf32> -> vector<16x32xf32>
    %33 = arith.addf %29, %32 : vector<16x32xf32>
    %c0_20 = arith.constant 0 : index
    %c0_21 = arith.constant 0 : index
    %c0_22 = arith.constant 0 : index
    %34 = vector.load %arg8[%c0_20, %c0_21, %c0_22] : memref<3x1x32xf32, #tpu.memory_space<vmem>>, vector<1x1x32xf32>
    %35 = vector.shape_cast %34 : vector<1x1x32xf32> to vector<1x32xf32>
    %36 = vector.broadcast %35 : vector<1x32xf32> to vector<16x32xf32>
    %37 = arith.addf %33, %36 : vector<16x32xf32>
    %cst_23 = arith.constant 0.000000e+00 : f32
    %38 = vector.broadcast %cst_23 : f32 to vector<16x32xf32>
    %39 = arith.maximumf %37, %38 : vector<16x32xf32>
    %c1_i32_24 = arith.constant 1 : i32
    %40 = tpu.dynamic_rotate %39 by %c1_i32_24 dim 0 : vector<16x32xf32>, i32 -> vector<16x32xf32>
    %41 = vector.broadcast %12 : vector<16x1xf32> to vector<16x32xf32>
    %42 = arith.mulf %40, %41 : vector<16x32xf32>
    %c15_i32_25 = arith.constant 15 : i32
    %43 = tpu.dynamic_rotate %39 by %c15_i32_25 dim 0 : vector<16x32xf32>, i32 -> vector<16x32xf32>
    %44 = vector.broadcast %16 : vector<16x1xf32> to vector<16x32xf32>
    %45 = arith.mulf %43, %44 : vector<16x32xf32>
    %c1 = arith.constant 1 : index
    %c0_26 = arith.constant 0 : index
    %c0_27 = arith.constant 0 : index
    %46 = vector.load %arg5[%c1, %c0_26, %c0_27] : memref<3x32x32xf32, #tpu.memory_space<vmem>>, vector<1x32x32xf32>
    %47 = vector.shape_cast %46 : vector<1x32x32xf32> to vector<32x32xf32>
    %cst_28 = arith.constant dense<0.000000e+00> : vector<16x32xf32>
    %48 = tpu.matmul %42, %47, %cst_28 {dimension_numbers = #tpu.dot_dimension_numbers<[1], [0], [0], [1], [0, 0, 1, 1], [], []>} : vector<16x32xf32>, vector<32x32xf32>, vector<16x32xf32> -> vector<16x32xf32>
    %c1_29 = arith.constant 1 : index
    %c0_30 = arith.constant 0 : index
    %c0_31 = arith.constant 0 : index
    %49 = vector.load %arg6[%c1_29, %c0_30, %c0_31] : memref<3x32x32xf32, #tpu.memory_space<vmem>>, vector<1x32x32xf32>
    %50 = vector.shape_cast %49 : vector<1x32x32xf32> to vector<32x32xf32>
    %cst_32 = arith.constant dense<0.000000e+00> : vector<16x32xf32>
    %51 = tpu.matmul %39, %50, %cst_32 {dimension_numbers = #tpu.dot_dimension_numbers<[1], [0], [0], [1], [0, 0, 1, 1], [], []>} : vector<16x32xf32>, vector<32x32xf32>, vector<16x32xf32> -> vector<16x32xf32>
    %52 = arith.addf %48, %51 : vector<16x32xf32>
    %c1_33 = arith.constant 1 : index
    %c0_34 = arith.constant 0 : index
    %c0_35 = arith.constant 0 : index
    %53 = vector.load %arg7[%c1_33, %c0_34, %c0_35] : memref<3x32x32xf32, #tpu.memory_space<vmem>>, vector<1x32x32xf32>
    %54 = vector.shape_cast %53 : vector<1x32x32xf32> to vector<32x32xf32>
    %cst_36 = arith.constant dense<0.000000e+00> : vector<16x32xf32>
    %55 = tpu.matmul %45, %54, %cst_36 {dimension_numbers = #tpu.dot_dimension_numbers<[1], [0], [0], [1], [0, 0, 1, 1], [], []>} : vector<16x32xf32>, vector<32x32xf32>, vector<16x32xf32> -> vector<16x32xf32>
    %56 = arith.addf %52, %55 : vector<16x32xf32>
    %c1_37 = arith.constant 1 : index
    %c0_38 = arith.constant 0 : index
    %c0_39 = arith.constant 0 : index
    %57 = vector.load %arg8[%c1_37, %c0_38, %c0_39] : memref<3x1x32xf32, #tpu.memory_space<vmem>>, vector<1x1x32xf32>
    %58 = vector.shape_cast %57 : vector<1x1x32xf32> to vector<1x32xf32>
    %59 = vector.broadcast %58 : vector<1x32xf32> to vector<16x32xf32>
    %60 = arith.addf %56, %59 : vector<16x32xf32>
    %cst_40 = arith.constant 0.000000e+00 : f32
    %61 = vector.broadcast %cst_40 : f32 to vector<16x32xf32>
    %62 = arith.maximumf %60, %61 : vector<16x32xf32>
    %c1_i32_41 = arith.constant 1 : i32
    %63 = tpu.dynamic_rotate %62 by %c1_i32_41 dim 0 : vector<16x32xf32>, i32 -> vector<16x32xf32>
    %64 = vector.broadcast %12 : vector<16x1xf32> to vector<16x32xf32>
    %65 = arith.mulf %63, %64 : vector<16x32xf32>
    %c15_i32_42 = arith.constant 15 : i32
    %66 = tpu.dynamic_rotate %62 by %c15_i32_42 dim 0 : vector<16x32xf32>, i32 -> vector<16x32xf32>
    %67 = vector.broadcast %16 : vector<16x1xf32> to vector<16x32xf32>
    %68 = arith.mulf %66, %67 : vector<16x32xf32>
    %c2 = arith.constant 2 : index
    %c0_43 = arith.constant 0 : index
    %c0_44 = arith.constant 0 : index
    %69 = vector.load %arg5[%c2, %c0_43, %c0_44] : memref<3x32x32xf32, #tpu.memory_space<vmem>>, vector<1x32x32xf32>
    %70 = vector.shape_cast %69 : vector<1x32x32xf32> to vector<32x32xf32>
    %cst_45 = arith.constant dense<0.000000e+00> : vector<16x32xf32>
    %71 = tpu.matmul %65, %70, %cst_45 {dimension_numbers = #tpu.dot_dimension_numbers<[1], [0], [0], [1], [0, 0, 1, 1], [], []>} : vector<16x32xf32>, vector<32x32xf32>, vector<16x32xf32> -> vector<16x32xf32>
    %c2_46 = arith.constant 2 : index
    %c0_47 = arith.constant 0 : index
    %c0_48 = arith.constant 0 : index
    %72 = vector.load %arg6[%c2_46, %c0_47, %c0_48] : memref<3x32x32xf32, #tpu.memory_space<vmem>>, vector<1x32x32xf32>
    %73 = vector.shape_cast %72 : vector<1x32x32xf32> to vector<32x32xf32>
    %cst_49 = arith.constant dense<0.000000e+00> : vector<16x32xf32>
    %74 = tpu.matmul %62, %73, %cst_49 {dimension_numbers = #tpu.dot_dimension_numbers<[1], [0], [0], [1], [0, 0, 1, 1], [], []>} : vector<16x32xf32>, vector<32x32xf32>, vector<16x32xf32> -> vector<16x32xf32>
    %75 = arith.addf %71, %74 : vector<16x32xf32>
    %c2_50 = arith.constant 2 : index
    %c0_51 = arith.constant 0 : index
    %c0_52 = arith.constant 0 : index
    %76 = vector.load %arg7[%c2_50, %c0_51, %c0_52] : memref<3x32x32xf32, #tpu.memory_space<vmem>>, vector<1x32x32xf32>
    %77 = vector.shape_cast %76 : vector<1x32x32xf32> to vector<32x32xf32>
    %cst_53 = arith.constant dense<0.000000e+00> : vector<16x32xf32>
    %78 = tpu.matmul %68, %77, %cst_53 {dimension_numbers = #tpu.dot_dimension_numbers<[1], [0], [0], [1], [0, 0, 1, 1], [], []>} : vector<16x32xf32>, vector<32x32xf32>, vector<16x32xf32> -> vector<16x32xf32>
    %79 = arith.addf %75, %78 : vector<16x32xf32>
    %c2_54 = arith.constant 2 : index
    %c0_55 = arith.constant 0 : index
    %c0_56 = arith.constant 0 : index
    %80 = vector.load %arg8[%c2_54, %c0_55, %c0_56] : memref<3x1x32xf32, #tpu.memory_space<vmem>>, vector<1x1x32xf32>
    %81 = vector.shape_cast %80 : vector<1x1x32xf32> to vector<1x32xf32>
    %82 = vector.broadcast %81 : vector<1x32xf32> to vector<16x32xf32>
    %83 = arith.addf %79, %82 : vector<16x32xf32>
    %cst_57 = arith.constant 0.000000e+00 : f32
    %84 = vector.broadcast %cst_57 : f32 to vector<16x32xf32>
    %85 = arith.maximumf %83, %84 : vector<16x32xf32>
    %c0_58 = arith.constant 0 : index
    %c0_59 = arith.constant 0 : index
    %86 = vector.load %arg9[%c0_58, %c0_59] : memref<32x128xf32, #tpu.memory_space<vmem>>, vector<32x128xf32>
    %cst_60 = arith.constant dense<0.000000e+00> : vector<16x128xf32>
    %87 = tpu.matmul %85, %86, %cst_60 {dimension_numbers = #tpu.dot_dimension_numbers<[1], [0], [0], [1], [0, 0, 1, 1], [], []>} : vector<16x32xf32>, vector<32x128xf32>, vector<16x128xf32> -> vector<16x128xf32>
    %c0_61 = arith.constant 0 : index
    %c0_62 = arith.constant 0 : index
    %88 = vector.load %arg10[%c0_61, %c0_62] : memref<1x128xf32, #tpu.memory_space<vmem>>, vector<1x128xf32>
    %89 = vector.broadcast %88 : vector<1x128xf32> to vector<16x128xf32>
    %90 = arith.addf %87, %89 : vector<16x128xf32>
    %c0_63 = arith.constant 0 : index
    %c0_64 = arith.constant 0 : index
    %91 = vector.load %arg11[%c0_63, %c0_64] : memref<16x128xf32, #tpu.memory_space<vmem>>, vector<16x128xf32>
    tpu.vector_store %arg11[%c0_63, %c0_64], %90 {strides = array<i32>} : memref<16x128xf32, #tpu.memory_space<vmem>>, vector<16x128xf32>,
    return
  }
  func.func @transform_0(%arg0: i32) -> (i32, i32) {
    %c0_i32 = arith.constant 0 : i32
    %c0_i32_0 = arith.constant 0 : i32
    return %arg0, %c0_i32 : i32, i32
  }
  func.func @transform_1(%arg0: i32) -> (i32, i32) {
    %c0_i32 = arith.constant 0 : i32
    %c0_i32_0 = arith.constant 0 : i32
    %c0_i32_1 = arith.constant 0 : i32
    return %c0_i32, %c0_i32_0 : i32, i32
  }
  func.func @transform_2(%arg0: i32) -> (i32, i32) {
    %c0_i32 = arith.constant 0 : i32
    %c0_i32_0 = arith.constant 0 : i32
    %c0_i32_1 = arith.constant 0 : i32
    return %c0_i32, %c0_i32_0 : i32, i32
  }
  func.func @transform_3(%arg0: i32) -> (i32, i32) {
    %c0_i32 = arith.constant 0 : i32
    %c0_i32_0 = arith.constant 0 : i32
    %c0_i32_1 = arith.constant 0 : i32
    return %c0_i32, %c0_i32_0 : i32, i32
  }
  func.func @transform_4(%arg0: i32) -> (i32, i32, i32) {
    %c0_i32 = arith.constant 0 : i32
    %c0_i32_0 = arith.constant 0 : i32
    %c0_i32_1 = arith.constant 0 : i32
    %c0_i32_2 = arith.constant 0 : i32
    return %c0_i32, %c0_i32_0, %c0_i32_1 : i32, i32, i32
  }
  func.func @transform_5(%arg0: i32) -> (i32, i32, i32) {
    %c0_i32 = arith.constant 0 : i32
    %c0_i32_0 = arith.constant 0 : i32
    %c0_i32_1 = arith.constant 0 : i32
    %c0_i32_2 = arith.constant 0 : i32
    return %c0_i32, %c0_i32_0, %c0_i32_1 : i32, i32, i32
  }
  func.func @transform_6(%arg0: i32) -> (i32, i32, i32) {
    %c0_i32 = arith.constant 0 : i32
    %c0_i32_0 = arith.constant 0 : i32
    %c0_i32_1 = arith.constant 0 : i32
    %c0_i32_2 = arith.constant 0 : i32
    return %c0_i32, %c0_i32_0, %c0_i32_1 : i32, i32, i32
  }
  func.func @transform_7(%arg0: i32) -> (i32, i32, i32) {
    %c0_i32 = arith.constant 0 : i32
    %c0_i32_0 = arith.constant 0 : i32
    %c0_i32_1 = arith.constant 0 : i32
    %c0_i32_2 = arith.constant 0 : i32
    return %c0_i32, %c0_i32_0, %c0_i32_1 : i32, i32, i32
  }
  func.func @transform_8(%arg0: i32) -> (i32, i32) {
    %c0_i32 = arith.constant 0 : i32
    %c0_i32_0 = arith.constant 0 : i32
    %c0_i32_1 = arith.constant 0 : i32
    return %c0_i32, %c0_i32_0 : i32, i32
  }
  func.func @transform_9(%arg0: i32) -> (i32, i32) {
    %c0_i32 = arith.constant 0 : i32
    %c0_i32_0 = arith.constant 0 : i32
    %c0_i32_1 = arith.constant 0 : i32
    return %c0_i32, %c0_i32_0 : i32, i32
  }
  func.func @transform_10(%arg0: i32) -> (i32, i32) {
    %c0_i32 = arith.constant 0 : i32
    %c0_i32_0 = arith.constant 0 : i32
    return %arg0, %c0_i32 : i32, i32
  }
}

</mosaic_0001>

<llo_original>
// kernel: tpu_custom_call.1
$region0: #{tpu_custom_call.1}
  #allocation0 [shape = 'u32[]', space=smem, size = 0x4, offset = 0x4, fixed_abs, tag = 'smem constant byte address 0x4 - core index']
  #allocation1 [shape = 'u32[144,128]{1,0:T(1,128)}', space=vmem, size = 0x12000, scoped, tag = 'internal scratch']
  %s0 = inlined_call_operand.vmem [shape: f32[32,21], index: 0, kind: input, shape index: {}]
  %s1 = inlined_call_operand.vmem [shape: f32[21,32], index: 1, kind: input, shape index: {}]
  %s2 = inlined_call_operand.vmem [shape: f32[1,32], index: 2, kind: input, shape index: {}]
  %s3 = inlined_call_operand.hbm [shape: f32[16,32], index: 3, kind: input, shape index: {}]
  %s4 = inlined_call_operand.hbm [shape: f32[3,32,32], index: 4, kind: input, shape index: {}]
  %s5 = inlined_call_operand.hbm [shape: f32[3,32,32], index: 5, kind: input, shape index: {}]
  %s6 = inlined_call_operand.hbm [shape: f32[3,32,32], index: 6, kind: input, shape index: {}]
  %s7 = inlined_call_operand.vmem [shape: f32[3,1,32], index: 7, kind: input, shape index: {}]
  %s8 = inlined_call_operand.vmem [shape: f32[32,128], index: 8, kind: input, shape index: {}]
  %s9 = inlined_call_operand.vmem [shape: f32[1,128], index: 9, kind: input, shape index: {}]
  %s10 = inlined_call_operand.hbm [shape: f32[32,128], index: 10, kind: output, shape index: {}]
  %s11 = sld [smem:[#allocation0]]
  $region89: #{tpu_custom_call.1} parent=0
    _
  %s13 = ssub.s32 1, %s11
  %s14 = scalar_select 0, %s13, %s11
  $region1: #{tpu_custom_call.1} parent=0
    #allocation2 [shape = 'u8[8192]{0}', space=vmem, size = 0x2000, scoped, tag = 'input window, operand 3, single buffered']
    #allocation3 [shape = 's32[2]{0}', space=sflag, size = 0x8, scoped, tag = 'scoped memory for tpu_custom_call.1']
    #allocation4 [shape = 's32[2]{0}', space=sflag, size = 0x8, scoped, tag = 'scoped memory for tpu_custom_call.1']
    #allocation5 [shape = 'u8[49152]{0}', space=vmem, size = 0xc000, scoped, tag = 'input window, operand 4, single buffered']
    #allocation6 [shape = 's32[1]{0}', space=sflag, size = 0x4, scoped, tag = 'scoped memory for tpu_custom_call.1']
    #allocation7 [shape = 'u8[49152]{0}', space=vmem, size = 0xc000, scoped, tag = 'input window, operand 5, single buffered']
    #allocation8 [shape = 'u8[49152]{0}', space=vmem, size = 0xc000, scoped, tag = 'input window, operand 6, single buffered']
    #allocation9 [shape = 's32[1]{0}', space=sflag, size = 0x4, scoped, tag = 'scoped memory for tpu_custom_call.1']
    #allocation10 [shape = 'u8[16384]{0}', space=vmem, size = 0x4000, scoped, tag = 'output window, operand 0']
    %15 = vsyncpa [#allocation3], 0
    %16 = vsyncpa [#allocation6], 0
    %17 = vsyncpa [#allocation9], 0
    %18 = vsyncpa [#allocation4], 0
    %s19 = scalar_lea.sflag [#allocation4], 1
    %20 = vsyncpa %s19, 0
    loop: start=0, step=1, limit=4
    $region2: #{tpu_custom_call.1} parent=1 // loop_pre_header
      _
    $region3: #{tpu_custom_call.1} parent=1 // loop_header
      %s22 = sphi 0, %s26
      %p23 = scmp.ge.s32.totalorder %s22, 4
      %s32 = sphi 0, %s34
      %s35 = sphi 0, %s32
      %s36 = sphi 0, %s35
      %s52 = sphi 0, %s36
      %s56 = sphi 0, %s56
      %s58 = sphi 0, %s56
      %s59 = sphi 0, %s58
      %s73 = sphi 0, %s59
      %s77 = sphi 0, %s77
      %s79 = sphi 0, %s77
      %s80 = sphi 0, %s79
      %s94 = sphi 0, %s80
      %s98 = sphi 0, %s98
      %s100 = sphi 0, %s98
      %s101 = sphi 0, %s100
      %s115 = sphi 0, %s101
      %s119 = sphi 0, %s119
      %s121 = sphi 0, %s119
      %s122 = sphi 0, %s121
      %s136 = sphi 0, %s122
      %s140 = sphi 0, %s140
      %s142 = sphi 0, %s140
      %s143 = sphi 0, %s142
      %s157 = sphi 0, %s143
      %s161 = sphi 0, %s161
      %s163 = sphi 0, %s161
      %s164 = sphi 0, %s163
      %s178 = sphi 0, %s164
      %s182 = sphi 0, %s182
      %s184 = sphi 0, %s182
      %s185 = sphi 0, %s184
      %s199 = sphi 0, %s185
      %s203 = sphi 0, %s203
      %s205 = sphi 0, %s203
      %s206 = sphi 0, %s205
      %s220 = sphi 0, %s206
      %s224 = sphi 0, %s224
      %s226 = sphi 0, %s224
      %s227 = sphi 0, %s226
      %s241 = sphi 0, %s227
      %s247 = sphi 0, %s249
      %s250 = sphi 0, %s247
      %s251 = sphi 0, %s250
      %s267 = sphi 0, %s251
    $region4: #{tpu_custom_call.1} parent=1 // loop_header_branch
      %25 = sbr.rel (%p23) target = $region8
    $region5: #{tpu_custom_call.1} parent=1 // loop_body
      %s27 = ssub.s32 %s22, 1
      %s28 = ssub.s32 %s22, 2
      %s29 = sadd.s32 %s22, 1
      %s30 = ssub.s32 %s22, %s29
      %p31 = scmp.eq.s32.totalorder %s30, 0
      %s33 = sadd.s32 %s32, 1
      %s34 = scalar_select %p31, %s32, %s33
      %p37 = pneg %p31
      %p38 = scmp.eq.s32.totalorder %s22, 1
      %p39 = por %p37, %p38
      %p40 = scmp.ne.s32.totalorder %s32, %s35
      %p41 = scmp.eq.s32.totalorder %s22, 0
      %p42 = por %p40, %p41
      %p43 = scmp.ne.s32.totalorder %s32, %s35
      %p44 = scmp.eq.s32.totalorder %s27, 1
      %p45 = por %p43, %p44
      %p46 = scmp.ne.s32.totalorder %s35, %s36
      %p47 = scmp.eq.s32.totalorder %s27, 0
      %p48 = por %p46, %p47
      %p49 = scmp.ne.s32.totalorder %s35, %s36
      %p50 = scmp.eq.s32.totalorder %s28, 1
      %p51 = por %p49, %p50
      %p53 = scmp.ne.s32.totalorder %s36, %s52
      %p54 = scmp.eq.s32.totalorder %s28, 0
      %p55 = por %p53, %p54
      %s57 = sadd.s32 %s56, 1
      %p60 = scmp.eq.s32.totalorder %s22, 1
      %p61 = scmp.ne.s32.totalorder %s56, %s58
      %p62 = scmp.eq.s32.totalorder %s22, 0
      %p63 = por %p61, %p62
      %p64 = scmp.ne.s32.totalorder %s56, %s58
      %p65 = scmp.eq.s32.totalorder %s27, 1
      %p66 = por %p64, %p65
      %p67 = scmp.ne.s32.totalorder %s58, %s59
      %p68 = scmp.eq.s32.totalorder %s27, 0
      %p69 = por %p67, %p68
      %p70 = scmp.ne.s32.totalorder %s58, %s59
      %p71 = scmp.eq.s32.totalorder %s28, 1
      %p72 = por %p70, %p71
      %p74 = scmp.ne.s32.totalorder %s59, %s73
      %p75 = scmp.eq.s32.totalorder %s28, 0
      %p76 = por %p74, %p75
      %s78 = sadd.s32 %s77, 1
      %p81 = scmp.eq.s32.totalorder %s22, 1
      %p82 = scmp.ne.s32.totalorder %s77, %s79
      %p83 = scmp.eq.s32.totalorder %s22, 0
      %p84 = por %p82, %p83
      %p85 = scmp.ne.s32.totalorder %s77, %s79
      %p86 = scmp.eq.s32.totalorder %s27, 1
      %p87 = por %p85, %p86
      %p88 = scmp.ne.s32.totalorder %s79, %s80
      %p89 = scmp.eq.s32.totalorder %s27, 0
      %p90 = por %p88, %p89
      %p91 = scmp.ne.s32.totalorder %s79, %s80
      %p92 = scmp.eq.s32.totalorder %s28, 1
      %p93 = por %p91, %p92
      %p95 = scmp.ne.s32.totalorder %s80, %s94
      %p96 = scmp.eq.s32.totalorder %s28, 0
      %p97 = por %p95, %p96
      %s99 = sadd.s32 %s98, 1
      %p102 = scmp.eq.s32.totalorder %s22, 1
      %p103 = scmp.ne.s32.totalorder %s98, %s100
      %p104 = scmp.eq.s32.totalorder %s22, 0
      %p105 = por %p103, %p104
      %p106 = scmp.ne.s32.totalorder %s98, %s100
      %p107 = scmp.eq.s32.totalorder %s27, 1
      %p108 = por %p106, %p107
      %p109 = scmp.ne.s32.totalorder %s100, %s101
      %p110 = scmp.eq.s32.totalorder %s27, 0
      %p111 = por %p109, %p110
      %p112 = scmp.ne.s32.totalorder %s100, %s101
      %p113 = scmp.eq.s32.totalorder %s28, 1
      %p114 = por %p112, %p113
      %p116 = scmp.ne.s32.totalorder %s101, %s115
      %p117 = scmp.eq.s32.totalorder %s28, 0
      %p118 = por %p116, %p117
      %s120 = sadd.s32 %s119, 1
      %p123 = scmp.eq.s32.totalorder %s22, 1
      %p124 = scmp.ne.s32.totalorder %s119, %s121
      %p125 = scmp.eq.s32.totalorder %s22, 0
      %p126 = por %p124, %p125
      %p127 = scmp.ne.s32.totalorder %s119, %s121
      %p128 = scmp.eq.s32.totalorder %s27, 1
      %p129 = por %p127, %p128
      %p130 = scmp.ne.s32.totalorder %s121, %s122
      %p131 = scmp.eq.s32.totalorder %s27, 0
      %p132 = por %p130, %p131
      %p133 = scmp.ne.s32.totalorder %s121, %s122
      %p134 = scmp.eq.s32.totalorder %s28, 1
      %p135 = por %p133, %p134
      %p137 = scmp.ne.s32.totalorder %s122, %s136
      %p138 = scmp.eq.s32.totalorder %s28, 0
      %p139 = por %p137, %p138
      %s141 = sadd.s32 %s140, 1
      %p144 = scmp.eq.s32.totalorder %s22, 1
      %p145 = scmp.ne.s32.totalorder %s140, %s142
      %p146 = scmp.eq.s32.totalorder %s22, 0
      %p147 = por %p145, %p146
      %p148 = scmp.ne.s32.totalorder %s140, %s142
      %p149 = scmp.eq.s32.totalorder %s27, 1
      %p150 = por %p148, %p149
      %p151 = scmp.ne.s32.totalorder %s142, %s143
      %p152 = scmp.eq.s32.totalorder %s27, 0
      %p153 = por %p151, %p152
      %p154 = scmp.ne.s32.totalorder %s142, %s143
      %p155 = scmp.eq.s32.totalorder %s28, 1
      %p156 = por %p154, %p155
      %p158 = scmp.ne.s32.totalorder %s143, %s157
      %p159 = scmp.eq.s32.totalorder %s28, 0
      %p160 = por %p158, %p159
      %s162 = sadd.s32 %s161, 1
      %p165 = scmp.eq.s32.totalorder %s22, 1
      %p166 = scmp.ne.s32.totalorder %s161, %s163
      %p167 = scmp.eq.s32.totalorder %s22, 0
      %p168 = por %p166, %p167
      %p169 = scmp.ne.s32.totalorder %s161, %s163
      %p170 = scmp.eq.s32.totalorder %s27, 1
      %p171 = por %p169, %p170
      %p172 = scmp.ne.s32.totalorder %s163, %s164
      %p173 = scmp.eq.s32.totalorder %s27, 0
      %p174 = por %p172, %p173
      %p175 = scmp.ne.s32.totalorder %s163, %s164
      %p176 = scmp.eq.s32.totalorder %s28, 1
      %p177 = por %p175, %p176
      %p179 = scmp.ne.s32.totalorder %s164, %s178
      %p180 = scmp.eq.s32.totalorder %s28, 0
      %p181 = por %p179, %p180
      %s183 = sadd.s32 %s182, 1
      %p186 = scmp.eq.s32.totalorder %s22, 1
      %p187 = scmp.ne.s32.totalorder %s182, %s184
      %p188 = scmp.eq.s32.totalorder %s22, 0
      %p189 = por %p187, %p188
      %p190 = scmp.ne.s32.totalorder %s182, %s184
      %p191 = scmp.eq.s32.totalorder %s27, 1
      %p192 = por %p190, %p191
      %p193 = scmp.ne.s32.totalorder %s184, %s185
      %p194 = scmp.eq.s32.totalorder %s27, 0
      %p195 = por %p193, %p194
      %p196 = scmp.ne.s32.totalorder %s184, %s185
      %p197 = scmp.eq.s32.totalorder %s28, 1
      %p198 = por %p196, %p197
      %p200 = scmp.ne.s32.totalorder %s185, %s199
      %p201 = scmp.eq.s32.totalorder %s28, 0
      %p202 = por %p200, %p201
      %s204 = sadd.s32 %s203, 1
      %p207 = scmp.eq.s32.totalorder %s22, 1
      %p208 = scmp.ne.s32.totalorder %s203, %s205
      %p209 = scmp.eq.s32.totalorder %s22, 0
      %p210 = por %p208, %p209
      %p211 = scmp.ne.s32.totalorder %s203, %s205
      %p212 = scmp.eq.s32.totalorder %s27, 1
      %p213 = por %p211, %p212
      %p214 = scmp.ne.s32.totalorder %s205, %s206
      %p215 = scmp.eq.s32.totalorder %s27, 0
      %p216 = por %p214, %p215
      %p217 = scmp.ne.s32.totalorder %s205, %s206
      %p218 = scmp.eq.s32.totalorder %s28, 1
      %p219 = por %p217, %p218
      %p221 = scmp.ne.s32.totalorder %s206, %s220
      %p222 = scmp.eq.s32.totalorder %s28, 0
      %p223 = por %p221, %p222
      %s225 = sadd.s32 %s224, 1
      %p228 = scmp.eq.s32.totalorder %s22, 1
      %p229 = scmp.ne.s32.totalorder %s224, %s226
      %p230 = scmp.eq.s32.totalorder %s22, 0
      %p231 = por %p229, %p230
      %p232 = scmp.ne.s32.totalorder %s224, %s226
      %p233 = scmp.eq.s32.totalorder %s27, 1
      %p234 = por %p232, %p233
      %p235 = scmp.ne.s32.totalorder %s226, %s227
      %p236 = scmp.eq.s32.totalorder %s27, 0
      %p237 = por %p235, %p236
      %p238 = scmp.ne.s32.totalorder %s226, %s227
      %p239 = scmp.eq.s32.totalorder %s28, 1
      %p240 = por %p238, %p239
      %p242 = scmp.ne.s32.totalorder %s227, %s241
      %p243 = scmp.eq.s32.totalorder %s28, 0
      %p244 = por %p242, %p243
      %s245 = ssub.s32 %s22, %s29
      %p246 = scmp.eq.s32.totalorder %s245, 0
      %s248 = sadd.s32 %s247, 1
      %s249 = scalar_select %p246, %s247, %s248
      %p252 = pneg %p246
      %p253 = scmp.eq.s32.totalorder %s22, 1
      %p254 = por %p252, %p253
      %p255 = scmp.ne.s32.totalorder %s247, %s250
      %p256 = scmp.eq.s32.totalorder %s22, 0
      %p257 = por %p255, %p256
      %p258 = scmp.ne.s32.totalorder %s247, %s250
      %p259 = scmp.eq.s32.totalorder %s27, 1
      %p260 = por %p258, %p259
      %p261 = scmp.ne.s32.totalorder %s250, %s251
      %p262 = scmp.eq.s32.totalorder %s27, 0
      %p263 = por %p261, %p262
      %p264 = scmp.ne.s32.totalorder %s250, %s251
      %p265 = scmp.eq.s32.totalorder %s28, 1
      %p266 = por %p264, %p265
      %p268 = scmp.ne.s32.totalorder %s251, %s267
      %p269 = scmp.eq.s32.totalorder %s28, 0
      %p270 = por %p268, %p269
      %p271 = scmp.le.s32.totalorder 1, %s22
      %p272 = scmp.lt.s32.totalorder %s22, 3
      %p273 = pnand %p271, %p272
      %p274 = pneg %p273
      // Predicated region
      $region9: #{tpu_custom_call.1} parent=5 // pred_check
        _
      $region10: #{tpu_custom_call.1} parent=5 // pred_check_branch
        %276 = sbr.rel (%p273) target = $region12
      $region11: #{tpu_custom_call.1} parent=5 // pred_region
        %s277 = ssub.s32 %s22, 1
        // Predicated region
        $region13: #{tpu_custom_call.1} parent=11 // pred_check
          %p278 = pneg %p69
        $region14: #{tpu_custom_call.1} parent=11 // pred_check_branch
          %280 = sbr.rel (%p278) target = $region16
        $region15: #{tpu_custom_call.1} parent=11 // pred_region
          _
        $region16: #{tpu_custom_call.1} parent=11 // pred_fallthru
          _
        // Predicated region
        $region17: #{tpu_custom_call.1} parent=11 // pred_check
          %p281 = pneg %p90
        $region18: #{tpu_custom_call.1} parent=11 // pred_check_branch
          %283 = sbr.rel (%p281) target = $region20
        $region19: #{tpu_custom_call.1} parent=11 // pred_region
          _
        $region20: #{tpu_custom_call.1} parent=11 // pred_fallthru
          _
        // Predicated region
        $region21: #{tpu_custom_call.1} parent=11 // pred_check
          %p284 = pneg %p111
        $region22: #{tpu_custom_call.1} parent=11 // pred_check_branch
          %286 = sbr.rel (%p284) target = $region24
        $region23: #{tpu_custom_call.1} parent=11 // pred_region
          %s288 = ssub.s32 256, 256
          %289 = vsyncadd [#allocation3], %s288
          %s290 = sshll.u32 [#allocation2], 4
          %s291 = int_to_ptr.vmem [resolvable:$true] %s290
          %296 = dma.hbm_to_vmem [thread:$0]  %s3, 256, %s291, [#allocation3], 128, 128, 8
        $region24: #{tpu_custom_call.1} parent=11 // pred_fallthru
          _
        // Predicated region
        $region25: #{tpu_custom_call.1} parent=11 // pred_check
          %p297 = pneg %p132
        $region26: #{tpu_custom_call.1} parent=11 // pred_check_branch
          %299 = sbr.rel (%p297) target = $region28
        $region27: #{tpu_custom_call.1} parent=11 // pred_region
          %s301 = ssub.s32 1536, 1536
          %302 = vsyncadd [#allocation6], %s301
          %s303 = sshll.u32 [#allocation5], 4
          %s304 = int_to_ptr.vmem [resolvable:$true] %s303
          %309 = dma.hbm_to_vmem [thread:$0]  %s4, 1536, %s304, [#allocation6], 128, 128, 8
        $region28: #{tpu_custom_call.1} parent=11 // pred_fallthru
          _
        // Predicated region
        $region29: #{tpu_custom_call.1} parent=11 // pred_check
          %p310 = pneg %p153
        $region30: #{tpu_custom_call.1} parent=11 // pred_check_branch
          %312 = sbr.rel (%p310) target = $region32
        $region31: #{tpu_custom_call.1} parent=11 // pred_region
          %s314 = ssub.s32 1536, 1536
          %315 = vsyncadd [#allocation6], %s314
          %s316 = sshll.u32 [#allocation7], 4
          %s317 = int_to_ptr.vmem [resolvable:$true] %s316
          %322 = dma.hbm_to_vmem [thread:$0]  %s5, 1536, %s317, [#allocation6], 128, 128, 8
        $region32: #{tpu_custom_call.1} parent=11 // pred_fallthru
          _
        // Predicated region
        $region33: #{tpu_custom_call.1} parent=11 // pred_check
          %p323 = pneg %p174
        $region34: #{tpu_custom_call.1} parent=11 // pred_check_branch
          %325 = sbr.rel (%p323) target = $region36
        $region35: #{tpu_custom_call.1} parent=11 // pred_region
          %s327 = ssub.s32 1536, 1536
          %328 = vsyncadd [#allocation9], %s327
          %s329 = sshll.u32 [#allocation8], 4
          %s330 = int_to_ptr.vmem [resolvable:$true] %s329
          %335 = dma.hbm_to_vmem [thread:$0]  %s6, 1536, %s330, [#allocation9], 128, 128, 8
        $region36: #{tpu_custom_call.1} parent=11 // pred_fallthru
          _
        // Predicated region
        $region37: #{tpu_custom_call.1} parent=11 // pred_check
          %p336 = pneg %p195
        $region38: #{tpu_custom_call.1} parent=11 // pred_check_branch
          %338 = sbr.rel (%p336) target = $region40
        $region39: #{tpu_custom_call.1} parent=11 // pred_region
          _
        $region40: #{tpu_custom_call.1} parent=11 // pred_fallthru
          _
        // Predicated region
        $region41: #{tpu_custom_call.1} parent=11 // pred_check
          %p339 = pneg %p216
        $region42: #{tpu_custom_call.1} parent=11 // pred_check_branch
          %341 = sbr.rel (%p339) target = $region44
        $region43: #{tpu_custom_call.1} parent=11 // pred_region
          _
        $region44: #{tpu_custom_call.1} parent=11 // pred_fallthru
          _
        // Predicated region
        $region45: #{tpu_custom_call.1} parent=11 // pred_check
          %p342 = pneg %p237
        $region46: #{tpu_custom_call.1} parent=11 // pred_check_branch
          %344 = sbr.rel (%p342) target = $region48
        $region47: #{tpu_custom_call.1} parent=11 // pred_region
          _
        $region48: #{tpu_custom_call.1} parent=11 // pred_fallthru
          _
      $region12: #{tpu_custom_call.1} parent=5 // pred_fallthru
        _
      %p345 = scmp.lt.s32.totalorder %s22, 2
      // Predicated region
      $region49: #{tpu_custom_call.1} parent=5 // pred_check
        %p346 = pneg %p345
      $region50: #{tpu_custom_call.1} parent=5 // pred_check_branch
        %348 = sbr.rel (%p346) target = $region52
      $region51: #{tpu_custom_call.1} parent=5 // pred_region
        // Predicated region
        $region53: #{tpu_custom_call.1} parent=51 // pred_check
          %p349 = pneg %p42
        $region54: #{tpu_custom_call.1} parent=51 // pred_check_branch
          %351 = sbr.rel (%p349) target = $region56
        $region55: #{tpu_custom_call.1} parent=51 // pred_region
          %s352 = smul.u32 2, %s22
          %p353 = scmp.lt.s32.totalorder %s352, 3
          %s354 = scalar_select %p353, %s352, 3
          %s355 = smul.addr %s354, 8
          %s356 = scalar_lea.vmem %s0, %s355
          %s357 = smul.u32 2, %s22
        $region56: #{tpu_custom_call.1} parent=51 // pred_fallthru
          _
      $region52: #{tpu_custom_call.1} parent=5 // pred_fallthru
        _
      %p358 = scmp.le.s32.totalorder 1, %s22
      %p359 = scmp.lt.s32.totalorder %s22, 3
      %p360 = pnand %p358, %p359
      %p361 = pneg %p360
      // Predicated region
      $region57: #{tpu_custom_call.1} parent=5 // pred_check
        _
      $region58: #{tpu_custom_call.1} parent=5 // pred_check_branch
        %363 = sbr.rel (%p360) target = $region60
      $region59: #{tpu_custom_call.1} parent=5 // pred_region
        %s364 = ssub.s32 %s22, 1
        // Predicated region
        $region61: #{tpu_custom_call.1} parent=59 // pred_check
          %p365 = pneg %p111
        $region62: #{tpu_custom_call.1} parent=59 // pred_check_branch
          %367 = sbr.rel (%p365) target = $region64
        $region63: #{tpu_custom_call.1} parent=59 // pred_region
          %368 = dma.done [#allocation3], 256
        $region64: #{tpu_custom_call.1} parent=59 // pred_fallthru
          _
        // Predicated region
        $region65: #{tpu_custom_call.1} parent=59 // pred_check
          %p369 = pneg %p132
        $region66: #{tpu_custom_call.1} parent=59 // pred_check_branch
          %371 = sbr.rel (%p369) target = $region68
        $region67: #{tpu_custom_call.1} parent=59 // pred_region
          %372 = dma.done [#allocation6], 1536
        $region68: #{tpu_custom_call.1} parent=59 // pred_fallthru
          _
        // Predicated region
        $region69: #{tpu_custom_call.1} parent=59 // pred_check
          %p373 = pneg %p153
        $region70: #{tpu_custom_call.1} parent=59 // pred_check_branch
          %375 = sbr.rel (%p373) target = $region72
        $region71: #{tpu_custom_call.1} parent=59 // pred_region
          %376 = dma.done [#allocation6], 1536
        $region72: #{tpu_custom_call.1} parent=59 // pred_fallthru
          _
        // Predicated region
        $region73: #{tpu_custom_call.1} parent=59 // pred_check
          %p377 = pneg %p174
        $region74: #{tpu_custom_call.1} parent=59 // pred_check_branch
          %379 = sbr.rel (%p377) target = $region76
        $region75: #{tpu_custom_call.1} parent=59 // pred_region
          %380 = dma.done [#allocation9], 1536
        $region76: #{tpu_custom_call.1} parent=59 // pred_fallthru
          _
        %s381 = smul.u32 2, %s27
        %p382 = scmp.lt.s32.totalorder %s381, 3
        %s383 = scalar_select %p382, %s381, 3
        %s384 = smul.addr %s383, 8
        %s385 = scalar_lea.vmem %s0, %s384
        %p386 = pneg %p48
        %p387 = pneg %p45
        %p388 = pneg %p69
        %p389 = pneg %p66
        %p390 = pneg %p90
        %p391 = pneg %p87
        %p392 = pneg %p111
        %p393 = pneg %p108
        %p394 = pneg %p132
        %p395 = pneg %p129
        %p396 = pneg %p153
        %p397 = pneg %p150
        %p398 = pneg %p174
        %p399 = pneg %p171
        %p400 = pneg %p195
        %p401 = pneg %p192
        %p402 = pneg %p216
        %p403 = pneg %p213
        %p404 = pneg %p237
        %p405 = pneg %p234
        %p406 = pneg %p263
        %p407 = pneg %p260
        %s408 = sand.u32 %s250, 1
        %s409 = scalar_lea.sflag [#allocation4], %s408
        %s410 = sand.u32 %s250, 1
        %s411 = smul.addr %s410, 16
        %s412 = scalar_lea.vmem [#allocation10], %s411
        %s413 = smul.u32 2, %s27
        %p414 = scmp.lt.s32.totalorder %s413, 3
        %s415 = scalar_select %p414, %s413, 3
        %s416 = smul.addr %s415, 8
        %s417 = scalar_lea.vmem %s0, %s416
        %s418 = smul.u32 2, %s27
        %s419 = smul.u32 2, %s27
        %v420 = vld [vmem:[%s417] sm:$0xff]
        %v421 = vld [vmem:[%s417 + $0x8] sm:$0xff]
        %v422 = vld [vmem:[%s1] sm:$0xff]
        %v423 = vld [vmem:[%s1 + $0x8] sm:$0xff]
        %v424 = vld [vmem:[%s1 + $0x10] sm:$0x1f]
        %v425 = vld [vmem:[%s2] sm:$0x1]
        %v427 = vlaneseq
        %v428 = vshrl.u32 %v427, 7
        %v429 = vsub.s32 0, %v428
        %v430 = vrot.slane %v425, %v429
        %vm432 = vcmask 171008
        %v434 = vsel %vm432, %v420, 0
        %v437 = vsel %vm432, %v421, 0
        %vm439 = vcmask 1044480
        %v441 = vsel %vm439, %v424, 0
        %443 = vmatprep.subr.mxu0 0.0
        %444 = vmatpush1.msra.mxu0 %v422
        %445 = vmatprep.subr.mxu0 0.0
        %446 = vmatpush1.msra.mxu0 %v423
        %447 = vmatprep.subr.mxu0 0.0
        %448 = vmatpush1.msra.mxu0 %v441
        %449 = vmatprep.subr.mxu0 0.0
        %450 = vmatpush1.msra.mxu0 0.0
        %451 = vmatprep.subr.mxu0 0.0
        %452 = vmatpush1.msra.mxu0 0.0
        %453 = vmatprep.subr.mxu0 0.0
        %454 = vmatpush1.msra.mxu0 0.0
        %455 = vmatprep.subr.mxu0 0.0
        %456 = vmatpush1.msra.mxu0 0.0
        %457 = vmatprep.subr.mxu0 0.0
        %458 = vmatpush1.msra.mxu0 0.0
        %459 = vmatprep.subr.mxu0 0.0
        %460 = vmatpush1.msra.mxu0 0.0
        %461 = vmatprep.subr.mxu0 0.0
        %462 = vmatpush1.msra.mxu0 0.0
        %463 = vmatprep.subr.mxu0 0.0
        %464 = vmatpush1.msra.mxu0 0.0
        %465 = vmatprep.subr.mxu0 0.0
        %466 = vmatpush1.msra.mxu0 0.0
        %467 = vmatprep.subr.mxu0 0.0
        %468 = vmatpush1.msra.mxu0 0.0
        %469 = vmatprep.subr.mxu0 0.0
        %470 = vmatpush1.msra.mxu0 0.0
        %471 = vmatprep.subr.mxu0 0.0
        %472 = vmatpush1.msra.mxu0 0.0
        %473 = vmatprep.subr.mxu0 0.0
        %474 = vmatpush1.msra.mxu0 0.0
        %475 = vmatprep.subr.mxu0 0.0
        %476 = vmatpush1.msra.mxu0 0.0
        %477 = vmatprep.subr.mxu0 0.0
        %478 = vmatpush1.msra.mxu0 0.0
        %479 = vmatprep.subr.mxu0 0.0
        %480 = vmatpush1.msra.mxu0 0.0
        %481 = vmatprep.subr.mxu0 0.0
        %482 = vmatpush1.msra.mxu0 0.0
        %483 = vmatprep.subr.mxu0 0.0
        %484 = vmatpush1.msra.mxu0 0.0
        %485 = vmatprep.subr.mxu0 0.0
        %486 = vmatpush1.msra.mxu0 0.0
        %487 = vmatprep.subr.mxu0 0.0
        %488 = vmatpush1.msra.mxu0 0.0
        %489 = vmatprep.subr.mxu0 0.0
        %490 = vmatpush1.msra.mxu0 0.0
        %491 = vmatprep.subr.mxu0 0.0
        %492 = vmatpush1.msra.mxu0 0.0
        %493 = vmatprep.subr.mxu0 0.0
        %494 = vmatpush1.msra.mxu0 0.0
        %495 = vmatprep.subr.mxu0 0.0
        %496 = vmatpush1.msra.mxu0 0.0
        %497 = vmatprep.subr.mxu0 0.0
        %498 = vmatpush1.msra.mxu0 0.0
        %499 = vmatprep.subr.mxu0 0.0
        %500 = vmatpush1.msra.mxu0 0.0
        %501 = vmatprep.subr.mxu0 0.0
        %502 = vmatpush1.msra.mxu0 0.0
        %503 = vmatprep.subr.mxu0 0.0
        %504 = vmatpush1.msra.mxu0 0.0
        %505 = vmatprep.subr.mxu0 0.0
        %506 = vmatpush1.msra.mxu0 0.0
        %507 = vmatprep.mubr.f32.mxu0 0.0
        %508 = vmatmul.mubr.f32.gmra.mrb[0].mxu0 %v434
        %v509 = vpop.f32.mrb[0].mxu0
        %v510 = vadd.f32 %v430, %v509
        %v511 = vpop.f32.mrb[0].mxu0
        %512 = vmatprep.mubr.f32.mxu0 0.0
        %513 = vmatmul.mubr.f32.gmra.mrb[0].mxu0 %v437
        %v514 = vpop.f32.mrb[0].mxu0
        %v515 = vadd.f32 %v430, %v514
        %v516 = vpop.f32.mrb[0].mxu0
        %517 = vdwg.mxu0
        %v518 = vld [vmem:[#allocation2] sm:$0xff]
        %v519 = vld [vmem:[#allocation2 + $0x8] sm:$0xff]
        %v520 = vadd.f32 %v510, %v518
        %v521 = vadd.f32 %v515, %v519
        %v522 = vlaneseq
        %v523 = vshrl.u32 %v522, 7
        %v524 = vadd.s32 %v523, 8
        %vm525 = vcmp.ne.s32.totalorder %v523, 0
        %vm526 = vcmp.ne.s32.totalorder %v524, 0
        %v527 = vsel %vm525, 1, 0
        %v528 = vsel %vm526, 1, 0
        %v529 = vcvt.s32.f32 %v527
        %v530 = vcvt.s32.f32 %v528
        %vm531 = vcmp.ne.s32.totalorder %v523, 15
        %vm532 = vcmp.ne.s32.totalorder %v524, 15
        %v533 = vsel %vm531, 1, 0
        %v534 = vsel %vm532, 1, 0
        %v535 = vcvt.s32.f32 %v533
        %v536 = vcvt.s32.f32 %v534
        %v537 = vrot.slane %v520, 7
        %v538 = vrot.slane %v521, 7
        %vm539 = vcmp.lt.s32.totalorder %v523, 1
        %v540 = vsel %vm539, %v537, %v538
        %v541 = vsel %vm539, %v538, %v537
        %v542 = vmul.f32 %v541, %v529
        %v543 = vmul.f32 %v540, %v530
        %v544 = vrot.slane %v520, 1
        %v545 = vrot.slane %v521, 1
        %vm546 = vcmp.lt.s32.totalorder %v523, 7
        %v547 = vsel %vm546, %v544, %v545
        %v548 = vsel %vm546, %v545, %v544
        %v549 = vmul.f32 %v547, %v535
        %v550 = vmul.f32 %v548, %v536
        %v551 = vld [vmem:[#allocation5] sm:$0xff]
        %v552 = vld [vmem:[#allocation5 + $0x8] sm:$0xff]
        %v553 = vld [vmem:[#allocation5 + $0x10] sm:$0xff]
        %v554 = vld [vmem:[#allocation5 + $0x18] sm:$0xff]
        %v555 = vld [vmem:[#allocation7] sm:$0xff]
        %v556 = vld [vmem:[#allocation7 + $0x8] sm:$0xff]
        %v557 = vld [vmem:[#allocation7 + $0x10] sm:$0xff]
        %v558 = vld [vmem:[#allocation7 + $0x18] sm:$0xff]
        %vm559 = vcmask 261120
        %v561 = vsel %vm559, %v520, 0
        %v564 = vsel %vm559, %v521, 0
        %566 = vmatprep.subr.mxu0 0.0
        %567 = vmatpush1.msra.mxu0 %v555
        %568 = vmatprep.subr.mxu0 0.0
        %569 = vmatpush1.msra.mxu0 %v556
        %570 = vmatprep.subr.mxu0 0.0
        %571 = vmatpush1.msra.mxu0 %v557
        %572 = vmatprep.subr.mxu0 0.0
        %573 = vmatpush1.msra.mxu0 %v558
        %574 = vmatprep.subr.mxu0 0.0
        %575 = vmatpush1.msra.mxu0 0.0
        %576 = vmatprep.subr.mxu0 0.0
        %577 = vmatpush1.msra.mxu0 0.0
        %578 = vmatprep.subr.mxu0 0.0
        %579 = vmatpush1.msra.mxu0 0.0
        %580 = vmatprep.subr.mxu0 0.0
        %581 = vmatpush1.msra.mxu0 0.0
        %582 = vmatprep.subr.mxu0 0.0
        %583 = vmatpush1.msra.mxu0 0.0
        %584 = vmatprep.subr.mxu0 0.0
        %585 = vmatpush1.msra.mxu0 0.0
        %586 = vmatprep.subr.mxu0 0.0
        %587 = vmatpush1.msra.mxu0 0.0
        %588 = vmatprep.subr.mxu0 0.0
        %589 = vmatpush1.msra.mxu0 0.0
        %590 = vmatprep.subr.mxu0 0.0
        %591 = vmatpush1.msra.mxu0 0.0
        %592 = vmatprep.subr.mxu0 0.0
        %593 = vmatpush1.msra.mxu0 0.0
        %594 = vmatprep.subr.mxu0 0.0
        %595 = vmatpush1.msra.mxu0 0.0
        %596 = vmatprep.subr.mxu0 0.0
        %597 = vmatpush1.msra.mxu0 0.0
        %598 = vmatprep.subr.mxu0 0.0
        %599 = vmatpush1.msra.mxu0 0.0
        %600 = vmatprep.subr.mxu0 0.0
        %601 = vmatpush1.msra.mxu0 0.0
        %602 = vmatprep.subr.mxu0 0.0
        %603 = vmatpush1.msra.mxu0 0.0
        %604 = vmatprep.subr.mxu0 0.0
        %605 = vmatpush1.msra.mxu0 0.0
        %606 = vmatprep.subr.mxu0 0.0
        %607 = vmatpush1.msra.mxu0 0.0
        %608 = vmatprep.subr.mxu0 0.0
        %609 = vmatpush1.msra.mxu0 0.0
        %610 = vmatprep.subr.mxu0 0.0
        %611 = vmatpush1.msra.mxu0 0.0
        %612 = vmatprep.subr.mxu0 0.0
        %613 = vmatpush1.msra.mxu0 0.0
        %614 = vmatprep.subr.mxu0 0.0
        %615 = vmatpush1.msra.mxu0 0.0
        %616 = vmatprep.subr.mxu0 0.0
        %617 = vmatpush1.msra.mxu0 0.0
        %618 = vmatprep.subr.mxu0 0.0
        %619 = vmatpush1.msra.mxu0 0.0
        %620 = vmatprep.subr.mxu0 0.0
        %621 = vmatpush1.msra.mxu0 0.0
        %622 = vmatprep.subr.mxu0 0.0
        %623 = vmatpush1.msra.mxu0 0.0
        %624 = vmatprep.subr.mxu0 0.0
        %625 = vmatpush1.msra.mxu0 0.0
        %626 = vmatprep.subr.mxu0 0.0
        %627 = vmatpush1.msra.mxu0 0.0
        %628 = vmatprep.subr.mxu0 0.0
        %629 = vmatpush1.msra.mxu0 0.0
        %630 = vmatprep.mubr.f32.mxu0 0.0
        %631 = vmatmul.mubr.f32.gmra.mrb[0].mxu0 %v561
        %v632 = vpop.f32.mrb[0].mxu0
        %v633 = vadd.f32 0.0, %v632
        %v634 = vpop.f32.mrb[0].mxu0
        %635 = vmatprep.mubr.f32.mxu0 0.0
        %636 = vmatmul.mubr.f32.gmra.mrb[0].mxu0 %v564
        %v637 = vpop.f32.mrb[0].mxu0
        %v638 = vadd.f32 0.0, %v637
        %v639 = vpop.f32.mrb[0].mxu0
        %640 = vdwg.mxu0
        %v642 = vsel %vm559, %v542, 0
        %v645 = vsel %vm559, %v543, 0
        %647 = vmatprep.subr.mxu0 0.0
        %648 = vmatpush1.msra.mxu0 %v551
        %649 = vmatprep.subr.mxu0 0.0
        %650 = vmatpush1.msra.mxu0 %v552
        %651 = vmatprep.subr.mxu0 0.0
        %652 = vmatpush1.msra.mxu0 %v553
        %653 = vmatprep.subr.mxu0 0.0
        %654 = vmatpush1.msra.mxu0 %v554
        %655 = vmatprep.subr.mxu0 0.0
        %656 = vmatpush1.msra.mxu0 0.0
        %657 = vmatprep.subr.mxu0 0.0
        %658 = vmatpush1.msra.mxu0 0.0
        %659 = vmatprep.subr.mxu0 0.0
        %660 = vmatpush1.msra.mxu0 0.0
        %661 = vmatprep.subr.mxu0 0.0
        %662 = vmatpush1.msra.mxu0 0.0
        %663 = vmatprep.subr.mxu0 0.0
        %664 = vmatpush1.msra.mxu0 0.0
        %665 = vmatprep.subr.mxu0 0.0
        %666 = vmatpush1.msra.mxu0 0.0
        %667 = vmatprep.subr.mxu0 0.0
        %668 = vmatpush1.msra.mxu0 0.0
        %669 = vmatprep.subr.mxu0 0.0
        %670 = vmatpush1.msra.mxu0 0.0
        %671 = vmatprep.subr.mxu0 0.0
        %672 = vmatpush1.msra.mxu0 0.0
        %673 = vmatprep.subr.mxu0 0.0
        %674 = vmatpush1.msra.mxu0 0.0
        %675 = vmatprep.subr.mxu0 0.0
        %676 = vmatpush1.msra.mxu0 0.0
        %677 = vmatprep.subr.mxu0 0.0
        %678 = vmatpush1.msra.mxu0 0.0
        %679 = vmatprep.subr.mxu0 0.0
        %680 = vmatpush1.msra.mxu0 0.0
        %681 = vmatprep.subr.mxu0 0.0
        %682 = vmatpush1.msra.mxu0 0.0
        %683 = vmatprep.subr.mxu0 0.0
        %684 = vmatpush1.msra.mxu0 0.0
        %685 = vmatprep.subr.mxu0 0.0
        %686 = vmatpush1.msra.mxu0 0.0
        %687 = vmatprep.subr.mxu0 0.0
        %688 = vmatpush1.msra.mxu0 0.0
        %689 = vmatprep.subr.mxu0 0.0
        %690 = vmatpush1.msra.mxu0 0.0
        %691 = vmatprep.subr.mxu0 0.0
        %692 = vmatpush1.msra.mxu0 0.0
        %693 = vmatprep.subr.mxu0 0.0
        %694 = vmatpush1.msra.mxu0 0.0
        %695 = vmatprep.subr.mxu0 0.0
        %696 = vmatpush1.msra.mxu0 0.0
        %697 = vmatprep.subr.mxu0 0.0
        %698 = vmatpush1.msra.mxu0 0.0
        %699 = vmatprep.subr.mxu0 0.0
        %700 = vmatpush1.msra.mxu0 0.0
        %701 = vmatprep.subr.mxu0 0.0
        %702 = vmatpush1.msra.mxu0 0.0
        %703 = vmatprep.subr.mxu0 0.0
        %704 = vmatpush1.msra.mxu0 0.0
        %705 = vmatprep.subr.mxu0 0.0
        %706 = vmatpush1.msra.mxu0 0.0
        %707 = vmatprep.subr.mxu0 0.0
        %708 = vmatpush1.msra.mxu0 0.0
        %709 = vmatprep.subr.mxu0 0.0
        %710 = vmatpush1.msra.mxu0 0.0
        %711 = vmatprep.mubr.f32.mxu0 0.0
        %712 = vmatmul.mubr.f32.gmra.mrb[0].mxu0 %v642
        %v713 = vpop.f32.mrb[0].mxu0
        %v714 = vadd.f32 %v633, %v713
        %v715 = vpop.f32.mrb[0].mxu0
        %716 = vmatprep.mubr.f32.mxu0 0.0
        %717 = vmatmul.mubr.f32.gmra.mrb[0].mxu0 %v645
        %v718 = vpop.f32.mrb[0].mxu0
        %v719 = vadd.f32 %v638, %v718
        %v720 = vpop.f32.mrb[0].mxu0
        %721 = vdwg.mxu0
        %v722 = vld [vmem:[#allocation8] sm:$0xff]
        %v723 = vld [vmem:[#allocation8 + $0x8] sm:$0xff]
        %v724 = vld [vmem:[#allocation8 + $0x10] sm:$0xff]
        %v725 = vld [vmem:[#allocation8 + $0x18] sm:$0xff]
        %v727 = vsel %vm559, %v549, 0
        %v730 = vsel %vm559, %v550, 0
        %732 = vmatprep.subr.mxu0 0.0
        %733 = vmatpush1.msra.mxu0 %v722
        %734 = vmatprep.subr.mxu0 0.0
        %735 = vmatpush1.msra.mxu0 %v723
        %736 = vmatprep.subr.mxu0 0.0
        %737 = vmatpush1.msra.mxu0 %v724
        %738 = vmatprep.subr.mxu0 0.0
        %739 = vmatpush1.msra.mxu0 %v725
        %740 = vmatprep.subr.mxu0 0.0
        %741 = vmatpush1.msra.mxu0 0.0
        %742 = vmatprep.subr.mxu0 0.0
        %743 = vmatpush1.msra.mxu0 0.0
        %744 = vmatprep.subr.mxu0 0.0
        %745 = vmatpush1.msra.mxu0 0.0
        %746 = vmatprep.subr.mxu0 0.0
        %747 = vmatpush1.msra.mxu0 0.0
        %748 = vmatprep.subr.mxu0 0.0
        %749 = vmatpush1.msra.mxu0 0.0
        %750 = vmatprep.subr.mxu0 0.0
        %751 = vmatpush1.msra.mxu0 0.0
        %752 = vmatprep.subr.mxu0 0.0
        %753 = vmatpush1.msra.mxu0 0.0
        %754 = vmatprep.subr.mxu0 0.0
        %755 = vmatpush1.msra.mxu0 0.0
        %756 = vmatprep.subr.mxu0 0.0
        %757 = vmatpush1.msra.mxu0 0.0
        %758 = vmatprep.subr.mxu0 0.0
        %759 = vmatpush1.msra.mxu0 0.0
        %760 = vmatprep.subr.mxu0 0.0
        %761 = vmatpush1.msra.mxu0 0.0
        %762 = vmatprep.subr.mxu0 0.0
        %763 = vmatpush1.msra.mxu0 0.0
        %764 = vmatprep.subr.mxu0 0.0
        %765 = vmatpush1.msra.mxu0 0.0
        %766 = vmatprep.subr.mxu0 0.0
        %767 = vmatpush1.msra.mxu0 0.0
        %768 = vmatprep.subr.mxu0 0.0
        %769 = vmatpush1.msra.mxu0 0.0
        %770 = vmatprep.subr.mxu0 0.0
        %771 = vmatpush1.msra.mxu0 0.0
        %772 = vmatprep.subr.mxu0 0.0
        %773 = vmatpush1.msra.mxu0 0.0
        %774 = vmatprep.subr.mxu0 0.0
        %775 = vmatpush1.msra.mxu0 0.0
        %776 = vmatprep.subr.mxu0 0.0
        %777 = vmatpush1.msra.mxu0 0.0
        %778 = vmatprep.subr.mxu0 0.0
        %779 = vmatpush1.msra.mxu0 0.0
        %780 = vmatprep.subr.mxu0 0.0
        %781 = vmatpush1.msra.mxu0 0.0
        %782 = vmatprep.subr.mxu0 0.0
        %783 = vmatpush1.msra.mxu0 0.0
        %784 = vmatprep.subr.mxu0 0.0
        %785 = vmatpush1.msra.mxu0 0.0
        %786 = vmatprep.subr.mxu0 0.0
        %787 = vmatpush1.msra.mxu0 0.0
        %788 = vmatprep.subr.mxu0 0.0
        %789 = vmatpush1.msra.mxu0 0.0
        %790 = vmatprep.subr.mxu0 0.0
        %791 = vmatpush1.msra.mxu0 0.0
        %792 = vmatprep.subr.mxu0 0.0
        %793 = vmatpush1.msra.mxu0 0.0
        %794 = vmatprep.subr.mxu0 0.0
        %795 = vmatpush1.msra.mxu0 0.0
        %796 = vmatprep.mubr.f32.mxu0 0.0
        %797 = vmatmul.mubr.f32.gmra.mrb[0].mxu0 %v727
        %v798 = vpop.f32.mrb[0].mxu0
        %v799 = vadd.f32 0.0, %v798
        %v800 = vpop.f32.mrb[0].mxu0
        %801 = vmatprep.mubr.f32.mxu0 0.0
        %802 = vmatmul.mubr.f32.gmra.mrb[0].mxu0 %v730
        %v803 = vpop.f32.mrb[0].mxu0
        %v804 = vadd.f32 0.0, %v803
        %v805 = vpop.f32.mrb[0].mxu0
        %806 = vdwg.mxu0
        %v807 = vadd.f32 %v714, %v799
        %v808 = vadd.f32 %v719, %v804
        %v809 = vld [vmem:[%s7] sm:$0x1]
        %v811 = vlaneseq
        %v812 = vshrl.u32 %v811, 7
        %v813 = vsub.s32 0, %v812
        %v814 = vrot.slane %v809, %v813
        %v816 = vadd.f32 %v807, %v814
        %v817 = vadd.f32 %v808, %v814
        %v818 = vmax.f32 %v816, 0.0
        %v819 = vmax.f32 %v817, 0.0
        %v820 = vrot.slane %v818, 7
        %v821 = vrot.slane %v819, 7
        %v822 = vsel %vm539, %v820, %v821
        %v823 = vsel %vm539, %v821, %v820
        %v824 = vmul.f32 %v823, %v529
        %v825 = vmul.f32 %v822, %v530
        %v826 = vrot.slane %v818, 1
        %v827 = vrot.slane %v819, 1
        %v828 = vsel %vm546, %v826, %v827
        %v829 = vsel %vm546, %v827, %v826
        %v830 = vmul.f32 %v828, %v535
        %v831 = vmul.f32 %v829, %v536
        %s832 = scalar_lea.vmem [#allocation5], 32
        %v833 = vld [vmem:[%s832] sm:$0xff]
        %v834 = vld [vmem:[%s832 + $0x8] sm:$0xff]
        %v835 = vld [vmem:[%s832 + $0x10] sm:$0xff]
        %v836 = vld [vmem:[%s832 + $0x18] sm:$0xff]
        %s837 = scalar_lea.vmem [#allocation7], 32
        %v838 = vld [vmem:[%s837] sm:$0xff]
        %v839 = vld [vmem:[%s837 + $0x8] sm:$0xff]
        %v840 = vld [vmem:[%s837 + $0x10] sm:$0xff]
        %v841 = vld [vmem:[%s837 + $0x18] sm:$0xff]
        %v843 = vsel %vm559, %v818, 0
        %v846 = vsel %vm559, %v819, 0
        %848 = vmatprep.subr.mxu0 0.0
        %849 = vmatpush1.msra.mxu0 %v838
        %850 = vmatprep.subr.mxu0 0.0
        %851 = vmatpush1.msra.mxu0 %v839
        %852 = vmatprep.subr.mxu0 0.0
        %853 = vmatpush1.msra.mxu0 %v840
        %854 = vmatprep.subr.mxu0 0.0
        %855 = vmatpush1.msra.mxu0 %v841
        %856 = vmatprep.subr.mxu0 0.0
        %857 = vmatpush1.msra.mxu0 0.0
        %858 = vmatprep.subr.mxu0 0.0
        %859 = vmatpush1.msra.mxu0 0.0
        %860 = vmatprep.subr.mxu0 0.0
        %861 = vmatpush1.msra.mxu0 0.0
        %862 = vmatprep.subr.mxu0 0.0
        %863 = vmatpush1.msra.mxu0 0.0
        %864 = vmatprep.subr.mxu0 0.0
        %865 = vmatpush1.msra.mxu0 0.0
        %866 = vmatprep.subr.mxu0 0.0
        %867 = vmatpush1.msra.mxu0 0.0
        %868 = vmatprep.subr.mxu0 0.0
        %869 = vmatpush1.msra.mxu0 0.0
        %870 = vmatprep.subr.mxu0 0.0
        %871 = vmatpush1.msra.mxu0 0.0
        %872 = vmatprep.subr.mxu0 0.0
        %873 = vmatpush1.msra.mxu0 0.0
        %874 = vmatprep.subr.mxu0 0.0
        %875 = vmatpush1.msra.mxu0 0.0
        %876 = vmatprep.subr.mxu0 0.0
        %877 = vmatpush1.msra.mxu0 0.0
        %878 = vmatprep.subr.mxu0 0.0
        %879 = vmatpush1.msra.mxu0 0.0
        %880 = vmatprep.subr.mxu0 0.0
        %881 = vmatpush1.msra.mxu0 0.0
        %882 = vmatprep.subr.mxu0 0.0
        %883 = vmatpush1.msra.mxu0 0.0
        %884 = vmatprep.subr.mxu0 0.0
        %885 = vmatpush1.msra.mxu0 0.0
        %886 = vmatprep.subr.mxu0 0.0
        %887 = vmatpush1.msra.mxu0 0.0
        %888 = vmatprep.subr.mxu0 0.0
        %889 = vmatpush1.msra.mxu0 0.0
        %890 = vmatprep.subr.mxu0 0.0
        %891 = vmatpush1.msra.mxu0 0.0
        %892 = vmatprep.subr.mxu0 0.0
        %893 = vmatpush1.msra.mxu0 0.0
        %894 = vmatprep.subr.mxu0 0.0
        %895 = vmatpush1.msra.mxu0 0.0
        %896 = vmatprep.subr.mxu0 0.0
        %897 = vmatpush1.msra.mxu0 0.0
        %898 = vmatprep.subr.mxu0 0.0
        %899 = vmatpush1.msra.mxu0 0.0
        %900 = vmatprep.subr.mxu0 0.0
        %901 = vmatpush1.msra.mxu0 0.0
        %902 = vmatprep.subr.mxu0 0.0
        %903 = vmatpush1.msra.mxu0 0.0
        %904 = vmatprep.subr.mxu0 0.0
        %905 = vmatpush1.msra.mxu0 0.0
        %906 = vmatprep.subr.mxu0 0.0
        %907 = vmatpush1.msra.mxu0 0.0
        %908 = vmatprep.subr.mxu0 0.0
        %909 = vmatpush1.msra.mxu0 0.0
        %910 = vmatprep.subr.mxu0 0.0
        %911 = vmatpush1.msra.mxu0 0.0
        %912 = vmatprep.mubr.f32.mxu0 0.0
        %913 = vmatmul.mubr.f32.gmra.mrb[0].mxu0 %v843
        %v914 = vpop.f32.mrb[0].mxu0
        %v915 = vadd.f32 0.0, %v914
        %v916 = vpop.f32.mrb[0].mxu0
        %917 = vmatprep.mubr.f32.mxu0 0.0
        %918 = vmatmul.mubr.f32.gmra.mrb[0].mxu0 %v846
        %v919 = vpop.f32.mrb[0].mxu0
        %v920 = vadd.f32 0.0, %v919
        %v921 = vpop.f32.mrb[0].mxu0
        %922 = vdwg.mxu0
        %v924 = vsel %vm559, %v824, 0
        %v927 = vsel %vm559, %v825, 0
        %929 = vmatprep.subr.mxu0 0.0
        %930 = vmatpush1.msra.mxu0 %v833
        %931 = vmatprep.subr.mxu0 0.0
        %932 = vmatpush1.msra.mxu0 %v834
        %933 = vmatprep.subr.mxu0 0.0
        %934 = vmatpush1.msra.mxu0 %v835
        %935 = vmatprep.subr.mxu0 0.0
        %936 = vmatpush1.msra.mxu0 %v836
        %937 = vmatprep.subr.mxu0 0.0
        %938 = vmatpush1.msra.mxu0 0.0
        %939 = vmatprep.subr.mxu0 0.0
        %940 = vmatpush1.msra.mxu0 0.0
        %941 = vmatprep.subr.mxu0 0.0
        %942 = vmatpush1.msra.mxu0 0.0
        %943 = vmatprep.subr.mxu0 0.0
        %944 = vmatpush1.msra.mxu0 0.0
        %945 = vmatprep.subr.mxu0 0.0
        %946 = vmatpush1.msra.mxu0 0.0
        %947 = vmatprep.subr.mxu0 0.0
        %948 = vmatpush1.msra.mxu0 0.0
        %949 = vmatprep.subr.mxu0 0.0
        %950 = vmatpush1.msra.mxu0 0.0
        %951 = vmatprep.subr.mxu0 0.0
        %952 = vmatpush1.msra.mxu0 0.0
        %953 = vmatprep.subr.mxu0 0.0
        %954 = vmatpush1.msra.mxu0 0.0
        %955 = vmatprep.subr.mxu0 0.0
        %956 = vmatpush1.msra.mxu0 0.0
        %957 = vmatprep.subr.mxu0 0.0
        %958 = vmatpush1.msra.mxu0 0.0
        %959 = vmatprep.subr.mxu0 0.0
        %960 = vmatpush1.msra.mxu0 0.0
        %961 = vmatprep.subr.mxu0 0.0
        %962 = vmatpush1.msra.mxu0 0.0
        %963 = vmatprep.subr.mxu0 0.0
        %964 = vmatpush1.msra.mxu0 0.0
        %965 = vmatprep.subr.mxu0 0.0
        %966 = vmatpush1.msra.mxu0 0.0
        %967 = vmatprep.subr.mxu0 0.0
        %968 = vmatpush1.msra.mxu0 0.0
        %969 = vmatprep.subr.mxu0 0.0
        %970 = vmatpush1.msra.mxu0 0.0
        %971 = vmatprep.subr.mxu0 0.0
        %972 = vmatpush1.msra.mxu0 0.0
        %973 = vmatprep.subr.mxu0 0.0
        %974 = vmatpush1.msra.mxu0 0.0
        %975 = vmatprep.subr.mxu0 0.0
        %976 = vmatpush1.msra.mxu0 0.0
        %977 = vmatprep.subr.mxu0 0.0
        %978 = vmatpush1.msra.mxu0 0.0
        %979 = vmatprep.subr.mxu0 0.0
        %980 = vmatpush1.msra.mxu0 0.0
        %981 = vmatprep.subr.mxu0 0.0
        %982 = vmatpush1.msra.mxu0 0.0
        %983 = vmatprep.subr.mxu0 0.0
        %984 = vmatpush1.msra.mxu0 0.0
        %985 = vmatprep.subr.mxu0 0.0
        %986 = vmatpush1.msra.mxu0 0.0
        %987 = vmatprep.subr.mxu0 0.0
        %988 = vmatpush1.msra.mxu0 0.0
        %989 = vmatprep.subr.mxu0 0.0
        %990 = vmatpush1.msra.mxu0 0.0
        %991 = vmatprep.subr.mxu0 0.0
        %992 = vmatpush1.msra.mxu0 0.0
        %993 = vmatprep.mubr.f32.mxu0 0.0
        %994 = vmatmul.mubr.f32.gmra.mrb[0].mxu0 %v924
        %v995 = vpop.f32.mrb[0].mxu0
        %v996 = vadd.f32 %v915, %v995
        %v997 = vpop.f32.mrb[0].mxu0
        %998 = vmatprep.mubr.f32.mxu0 0.0
        %999 = vmatmul.mubr.f32.gmra.mrb[0].mxu0 %v927
        %v1000 = vpop.f32.mrb[0].mxu0
        %v1001 = vadd.f32 %v920, %v1000
        %v1002 = vpop.f32.mrb[0].mxu0
        %1003 = vdwg.mxu0
        %s1004 = scalar_lea.vmem [#allocation8], 32
        %v1005 = vld [vmem:[%s1004] sm:$0xff]
        %v1006 = vld [vmem:[%s1004 + $0x8] sm:$0xff]
        %v1007 = vld [vmem:[%s1004 + $0x10] sm:$0xff]
        %v1008 = vld [vmem:[%s1004 + $0x18] sm:$0xff]
        %v1010 = vsel %vm559, %v830, 0
        %v1013 = vsel %vm559, %v831, 0
        %1015 = vmatprep.subr.mxu0 0.0
        %1016 = vmatpush1.msra.mxu0 %v1005
        %1017 = vmatprep.subr.mxu0 0.0
        %1018 = vmatpush1.msra.mxu0 %v1006
        %1019 = vmatprep.subr.mxu0 0.0
        %1020 = vmatpush1.msra.mxu0 %v1007
        %1021 = vmatprep.subr.mxu0 0.0
        %1022 = vmatpush1.msra.mxu0 %v1008
        %1023 = vmatprep.subr.mxu0 0.0
        %1024 = vmatpush1.msra.mxu0 0.0
        %1025 = vmatprep.subr.mxu0 0.0
        %1026 = vmatpush1.msra.mxu0 0.0
        %1027 = vmatprep.subr.mxu0 0.0
        %1028 = vmatpush1.msra.mxu0 0.0
        %1029 = vmatprep.subr.mxu0 0.0
        %1030 = vmatpush1.msra.mxu0 0.0
        %1031 = vmatprep.subr.mxu0 0.0
        %1032 = vmatpush1.msra.mxu0 0.0
        %1033 = vmatprep.subr.mxu0 0.0
        %1034 = vmatpush1.msra.mxu0 0.0
        %1035 = vmatprep.subr.mxu0 0.0
        %1036 = vmatpush1.msra.mxu0 0.0
        %1037 = vmatprep.subr.mxu0 0.0
        %1038 = vmatpush1.msra.mxu0 0.0
        %1039 = vmatprep.subr.mxu0 0.0
        %1040 = vmatpush1.msra.mxu0 0.0
        %1041 = vmatprep.subr.mxu0 0.0
        %1042 = vmatpush1.msra.mxu0 0.0
        %1043 = vmatprep.subr.mxu0 0.0
        %1044 = vmatpush1.msra.mxu0 0.0
        %1045 = vmatprep.subr.mxu0 0.0
        %1046 = vmatpush1.msra.mxu0 0.0
        %1047 = vmatprep.subr.mxu0 0.0
        %1048 = vmatpush1.msra.mxu0 0.0
        %1049 = vmatprep.subr.mxu0 0.0
        %1050 = vmatpush1.msra.mxu0 0.0
        %1051 = vmatprep.subr.mxu0 0.0
        %1052 = vmatpush1.msra.mxu0 0.0
        %1053 = vmatprep.subr.mxu0 0.0
        %1054 = vmatpush1.msra.mxu0 0.0
        %1055 = vmatprep.subr.mxu0 0.0
        %1056 = vmatpush1.msra.mxu0 0.0
        %1057 = vmatprep.subr.mxu0 0.0
        %1058 = vmatpush1.msra.mxu0 0.0
        %1059 = vmatprep.subr.mxu0 0.0
        %1060 = vmatpush1.msra.mxu0 0.0
        %1061 = vmatprep.subr.mxu0 0.0
        %1062 = vmatpush1.msra.mxu0 0.0
        %1063 = vmatprep.subr.mxu0 0.0
        %1064 = vmatpush1.msra.mxu0 0.0
        %1065 = vmatprep.subr.mxu0 0.0
        %1066 = vmatpush1.msra.mxu0 0.0
        %1067 = vmatprep.subr.mxu0 0.0
        %1068 = vmatpush1.msra.mxu0 0.0
        %1069 = vmatprep.subr.mxu0 0.0
        %1070 = vmatpush1.msra.mxu0 0.0
        %1071 = vmatprep.subr.mxu0 0.0
        %1072 = vmatpush1.msra.mxu0 0.0
        %1073 = vmatprep.subr.mxu0 0.0
        %1074 = vmatpush1.msra.mxu0 0.0
        %1075 = vmatprep.subr.mxu0 0.0
        %1076 = vmatpush1.msra.mxu0 0.0
        %1077 = vmatprep.subr.mxu0 0.0
        %1078 = vmatpush1.msra.mxu0 0.0
        %1079 = vmatprep.mubr.f32.mxu0 0.0
        %1080 = vmatmul.mubr.f32.gmra.mrb[0].mxu0 %v1010
        %v1081 = vpop.f32.mrb[0].mxu0
        %v1082 = vadd.f32 0.0, %v1081
        %v1083 = vpop.f32.mrb[0].mxu0
        %1084 = vmatprep.mubr.f32.mxu0 0.0
        %1085 = vmatmul.mubr.f32.gmra.mrb[0].mxu0 %v1013
        %v1086 = vpop.f32.mrb[0].mxu0
        %v1087 = vadd.f32 0.0, %v1086
        %v1088 = vpop.f32.mrb[0].mxu0
        %1089 = vdwg.mxu0
        %v1090 = vadd.f32 %v996, %v1082
        %v1091 = vadd.f32 %v1001, %v1087
        %s1092 = scalar_lea.vmem %s7, 1
        %v1093 = vld [vmem:[%s1092] sm:$0x1]
        %v1095 = vlaneseq
        %v1096 = vshrl.u32 %v1095, 7
        %v1097 = vsub.s32 0, %v1096
        %v1098 = vrot.slane %v1093, %v1097
        %v1100 = vadd.f32 %v1090, %v1098
        %v1101 = vadd.f32 %v1091, %v1098
        %v1102 = vmax.f32 %v1100, 0.0
        %v1103 = vmax.f32 %v1101, 0.0
        %v1104 = vrot.slane %v1102, 7
        %v1105 = vrot.slane %v1103, 7
        %v1106 = vsel %vm539, %v1104, %v1105
        %v1107 = vsel %vm539, %v1105, %v1104
        %v1108 = vmul.f32 %v1107, %v529
        %v1109 = vmul.f32 %v1106, %v530
        %v1110 = vrot.slane %v1102, 1
        %v1111 = vrot.slane %v1103, 1
        %v1112 = vsel %vm546, %v1110, %v1111
        %v1113 = vsel %vm546, %v1111, %v1110
        %v1114 = vmul.f32 %v1112, %v535
        %v1115 = vmul.f32 %v1113, %v536
        %s1116 = scalar_lea.vmem [#allocation5], 64
        %v1117 = vld [vmem:[%s1116] sm:$0xff]
        %v1118 = vld [vmem:[%s1116 + $0x8] sm:$0xff]
        %v1119 = vld [vmem:[%s1116 + $0x10] sm:$0xff]
        %v1120 = vld [vmem:[%s1116 + $0x18] sm:$0xff]
        %s1121 = scalar_lea.vmem [#allocation7], 64
        %v1122 = vld [vmem:[%s1121] sm:$0xff]
        %v1123 = vld [vmem:[%s1121 + $0x8] sm:$0xff]
        %v1124 = vld [vmem:[%s1121 + $0x10] sm:$0xff]
        %v1125 = vld [vmem:[%s1121 + $0x18] sm:$0xff]
        %v1127 = vsel %vm559, %v1102, 0
        %v1130 = vsel %vm559, %v1103, 0
        %1132 = vmatprep.subr.mxu0 0.0
        %1133 = vmatpush1.msra.mxu0 %v1122
        %1134 = vmatprep.subr.mxu0 0.0
        %1135 = vmatpush1.msra.mxu0 %v1123
        %1136 = vmatprep.subr.mxu0 0.0
        %1137 = vmatpush1.msra.mxu0 %v1124
        %1138 = vmatprep.subr.mxu0 0.0
        %1139 = vmatpush1.msra.mxu0 %v1125
        %1140 = vmatprep.subr.mxu0 0.0
        %1141 = vmatpush1.msra.mxu0 0.0
        %1142 = vmatprep.subr.mxu0 0.0
        %1143 = vmatpush1.msra.mxu0 0.0
        %1144 = vmatprep.subr.mxu0 0.0
        %1145 = vmatpush1.msra.mxu0 0.0
        %1146 = vmatprep.subr.mxu0 0.0
        %1147 = vmatpush1.msra.mxu0 0.0
        %1148 = vmatprep.subr.mxu0 0.0
        %1149 = vmatpush1.msra.mxu0 0.0
        %1150 = vmatprep.subr.mxu0 0.0
        %1151 = vmatpush1.msra.mxu0 0.0
        %1152 = vmatprep.subr.mxu0 0.0
        %1153 = vmatpush1.msra.mxu0 0.0
        %1154 = vmatprep.subr.mxu0 0.0
        %1155 = vmatpush1.msra.mxu0 0.0
        %1156 = vmatprep.subr.mxu0 0.0
        %1157 = vmatpush1.msra.mxu0 0.0
        %1158 = vmatprep.subr.mxu0 0.0
        %1159 = vmatpush1.msra.mxu0 0.0
        %1160 = vmatprep.subr.mxu0 0.0
        %1161 = vmatpush1.msra.mxu0 0.0
        %1162 = vmatprep.subr.mxu0 0.0
        %1163 = vmatpush1.msra.mxu0 0.0
        %1164 = vmatprep.subr.mxu0 0.0
        %1165 = vmatpush1.msra.mxu0 0.0
        %1166 = vmatprep.subr.mxu0 0.0
        %1167 = vmatpush1.msra.mxu0 0.0
        %1168 = vmatprep.subr.mxu0 0.0
        %1169 = vmatpush1.msra.mxu0 0.0
        %1170 = vmatprep.subr.mxu0 0.0
        %1171 = vmatpush1.msra.mxu0 0.0
        %1172 = vmatprep.subr.mxu0 0.0
        %1173 = vmatpush1.msra.mxu0 0.0
        %1174 = vmatprep.subr.mxu0 0.0
        %1175 = vmatpush1.msra.mxu0 0.0
        %1176 = vmatprep.subr.mxu0 0.0
        %1177 = vmatpush1.msra.mxu0 0.0
        %1178 = vmatprep.subr.mxu0 0.0
        %1179 = vmatpush1.msra.mxu0 0.0
        %1180 = vmatprep.subr.mxu0 0.0
        %1181 = vmatpush1.msra.mxu0 0.0
        %1182 = vmatprep.subr.mxu0 0.0
        %1183 = vmatpush1.msra.mxu0 0.0
        %1184 = vmatprep.subr.mxu0 0.0
        %1185 = vmatpush1.msra.mxu0 0.0
        %1186 = vmatprep.subr.mxu0 0.0
        %1187 = vmatpush1.msra.mxu0 0.0
        %1188 = vmatprep.subr.mxu0 0.0
        %1189 = vmatpush1.msra.mxu0 0.0
        %1190 = vmatprep.subr.mxu0 0.0
        %1191 = vmatpush1.msra.mxu0 0.0
        %1192 = vmatprep.subr.mxu0 0.0
        %1193 = vmatpush1.msra.mxu0 0.0
        %1194 = vmatprep.subr.mxu0 0.0
        %1195 = vmatpush1.msra.mxu0 0.0
        %1196 = vmatprep.mubr.f32.mxu0 0.0
        %1197 = vmatmul.mubr.f32.gmra.mrb[0].mxu0 %v1127
        %v1198 = vpop.f32.mrb[0].mxu0
        %v1199 = vadd.f32 0.0, %v1198
        %v1200 = vpop.f32.mrb[0].mxu0
        %1201 = vmatprep.mubr.f32.mxu0 0.0
        %1202 = vmatmul.mubr.f32.gmra.mrb[0].mxu0 %v1130
        %v1203 = vpop.f32.mrb[0].mxu0
        %v1204 = vadd.f32 0.0, %v1203
        %v1205 = vpop.f32.mrb[0].mxu0
        %1206 = vdwg.mxu0
        %v1208 = vsel %vm559, %v1108, 0
        %v1211 = vsel %vm559, %v1109, 0
        %1213 = vmatprep.subr.mxu0 0.0
        %1214 = vmatpush1.msra.mxu0 %v1117
        %1215 = vmatprep.subr.mxu0 0.0
        %1216 = vmatpush1.msra.mxu0 %v1118
        %1217 = vmatprep.subr.mxu0 0.0
        %1218 = vmatpush1.msra.mxu0 %v1119
        %1219 = vmatprep.subr.mxu0 0.0
        %1220 = vmatpush1.msra.mxu0 %v1120
        %1221 = vmatprep.subr.mxu0 0.0
        %1222 = vmatpush1.msra.mxu0 0.0
        %1223 = vmatprep.subr.mxu0 0.0
        %1224 = vmatpush1.msra.mxu0 0.0
        %1225 = vmatprep.subr.mxu0 0.0
        %1226 = vmatpush1.msra.mxu0 0.0
        %1227 = vmatprep.subr.mxu0 0.0
        %1228 = vmatpush1.msra.mxu0 0.0
        %1229 = vmatprep.subr.mxu0 0.0
        %1230 = vmatpush1.msra.mxu0 0.0
        %1231 = vmatprep.subr.mxu0 0.0
        %1232 = vmatpush1.msra.mxu0 0.0
        %1233 = vmatprep.subr.mxu0 0.0
        %1234 = vmatpush1.msra.mxu0 0.0
        %1235 = vmatprep.subr.mxu0 0.0
        %1236 = vmatpush1.msra.mxu0 0.0
        %1237 = vmatprep.subr.mxu0 0.0
        %1238 = vmatpush1.msra.mxu0 0.0
        %1239 = vmatprep.subr.mxu0 0.0
        %1240 = vmatpush1.msra.mxu0 0.0
        %1241 = vmatprep.subr.mxu0 0.0
        %1242 = vmatpush1.msra.mxu0 0.0
        %1243 = vmatprep.subr.mxu0 0.0
        %1244 = vmatpush1.msra.mxu0 0.0
        %1245 = vmatprep.subr.mxu0 0.0
        %1246 = vmatpush1.msra.mxu0 0.0
        %1247 = vmatprep.subr.mxu0 0.0
        %1248 = vmatpush1.msra.mxu0 0.0
        %1249 = vmatprep.subr.mxu0 0.0
        %1250 = vmatpush1.msra.mxu0 0.0
        %1251 = vmatprep.subr.mxu0 0.0
        %1252 = vmatpush1.msra.mxu0 0.0
        %1253 = vmatprep.subr.mxu0 0.0
        %1254 = vmatpush1.msra.mxu0 0.0
        %1255 = vmatprep.subr.mxu0 0.0
        %1256 = vmatpush1.msra.mxu0 0.0
        %1257 = vmatprep.subr.mxu0 0.0
        %1258 = vmatpush1.msra.mxu0 0.0
        %1259 = vmatprep.subr.mxu0 0.0
        %1260 = vmatpush1.msra.mxu0 0.0
        %1261 = vmatprep.subr.mxu0 0.0
        %1262 = vmatpush1.msra.mxu0 0.0
        %1263 = vmatprep.subr.mxu0 0.0
        %1264 = vmatpush1.msra.mxu0 0.0
        %1265 = vmatprep.subr.mxu0 0.0
        %1266 = vmatpush1.msra.mxu0 0.0
        %1267 = vmatprep.subr.mxu0 0.0
        %1268 = vmatpush1.msra.mxu0 0.0
        %1269 = vmatprep.subr.mxu0 0.0
        %1270 = vmatpush1.msra.mxu0 0.0
        %1271 = vmatprep.subr.mxu0 0.0
        %1272 = vmatpush1.msra.mxu0 0.0
        %1273 = vmatprep.subr.mxu0 0.0
        %1274 = vmatpush1.msra.mxu0 0.0
        %1275 = vmatprep.subr.mxu0 0.0
        %1276 = vmatpush1.msra.mxu0 0.0
        %1277 = vmatprep.mubr.f32.mxu0 0.0
        %1278 = vmatmul.mubr.f32.gmra.mrb[0].mxu0 %v1208
        %v1279 = vpop.f32.mrb[0].mxu0
        %v1280 = vadd.f32 %v1199, %v1279
        %v1281 = vpop.f32.mrb[0].mxu0
        %1282 = vmatprep.mubr.f32.mxu0 0.0
        %1283 = vmatmul.mubr.f32.gmra.mrb[0].mxu0 %v1211
        %v1284 = vpop.f32.mrb[0].mxu0
        %v1285 = vadd.f32 %v1204, %v1284
        %v1286 = vpop.f32.mrb[0].mxu0
        %1287 = vdwg.mxu0
        %s1288 = scalar_lea.vmem [#allocation8], 64
        %v1289 = vld [vmem:[%s1288] sm:$0xff]
        %v1290 = vld [vmem:[%s1288 + $0x8] sm:$0xff]
        %v1291 = vld [vmem:[%s1288 + $0x10] sm:$0xff]
        %v1292 = vld [vmem:[%s1288 + $0x18] sm:$0xff]
        %v1294 = vsel %vm559, %v1114, 0
        %v1297 = vsel %vm559, %v1115, 0
        %1299 = vmatprep.subr.mxu0 0.0
        %1300 = vmatpush1.msra.mxu0 %v1289
        %1301 = vmatprep.subr.mxu0 0.0
        %1302 = vmatpush1.msra.mxu0 %v1290
        %1303 = vmatprep.subr.mxu0 0.0
        %1304 = vmatpush1.msra.mxu0 %v1291
        %1305 = vmatprep.subr.mxu0 0.0
        %1306 = vmatpush1.msra.mxu0 %v1292
        %1307 = vmatprep.subr.mxu0 0.0
        %1308 = vmatpush1.msra.mxu0 0.0
        %1309 = vmatprep.subr.mxu0 0.0
        %1310 = vmatpush1.msra.mxu0 0.0
        %1311 = vmatprep.subr.mxu0 0.0
        %1312 = vmatpush1.msra.mxu0 0.0
        %1313 = vmatprep.subr.mxu0 0.0
        %1314 = vmatpush1.msra.mxu0 0.0
        %1315 = vmatprep.subr.mxu0 0.0
        %1316 = vmatpush1.msra.mxu0 0.0
        %1317 = vmatprep.subr.mxu0 0.0
        %1318 = vmatpush1.msra.mxu0 0.0
        %1319 = vmatprep.subr.mxu0 0.0
        %1320 = vmatpush1.msra.mxu0 0.0
        %1321 = vmatprep.subr.mxu0 0.0
        %1322 = vmatpush1.msra.mxu0 0.0
        %1323 = vmatprep.subr.mxu0 0.0
        %1324 = vmatpush1.msra.mxu0 0.0
        %1325 = vmatprep.subr.mxu0 0.0
        %1326 = vmatpush1.msra.mxu0 0.0
        %1327 = vmatprep.subr.mxu0 0.0
        %1328 = vmatpush1.msra.mxu0 0.0
        %1329 = vmatprep.subr.mxu0 0.0
        %1330 = vmatpush1.msra.mxu0 0.0
        %1331 = vmatprep.subr.mxu0 0.0
        %1332 = vmatpush1.msra.mxu0 0.0
        %1333 = vmatprep.subr.mxu0 0.0
        %1334 = vmatpush1.msra.mxu0 0.0
        %1335 = vmatprep.subr.mxu0 0.0
        %1336 = vmatpush1.msra.mxu0 0.0
        %1337 = vmatprep.subr.mxu0 0.0
        %1338 = vmatpush1.msra.mxu0 0.0
        %1339 = vmatprep.subr.mxu0 0.0
        %1340 = vmatpush1.msra.mxu0 0.0
        %1341 = vmatprep.subr.mxu0 0.0
        %1342 = vmatpush1.msra.mxu0 0.0
        %1343 = vmatprep.subr.mxu0 0.0
        %1344 = vmatpush1.msra.mxu0 0.0
        %1345 = vmatprep.subr.mxu0 0.0
        %1346 = vmatpush1.msra.mxu0 0.0
        %1347 = vmatprep.subr.mxu0 0.0
        %1348 = vmatpush1.msra.mxu0 0.0
        %1349 = vmatprep.subr.mxu0 0.0
        %1350 = vmatpush1.msra.mxu0 0.0
        %1351 = vmatprep.subr.mxu0 0.0
        %1352 = vmatpush1.msra.mxu0 0.0
        %1353 = vmatprep.subr.mxu0 0.0
        %1354 = vmatpush1.msra.mxu0 0.0
        %1355 = vmatprep.subr.mxu0 0.0
        %1356 = vmatpush1.msra.mxu0 0.0
        %1357 = vmatprep.subr.mxu0 0.0
        %1358 = vmatpush1.msra.mxu0 0.0
        %1359 = vmatprep.subr.mxu0 0.0
        %1360 = vmatpush1.msra.mxu0 0.0
        %1361 = vmatprep.subr.mxu0 0.0
        %1362 = vmatpush1.msra.mxu0 0.0
        %1363 = vmatprep.mubr.f32.mxu0 0.0
        %1364 = vmatmul.mubr.f32.gmra.mrb[0].mxu0 %v1294
        %v1365 = vpop.f32.mrb[0].mxu0
        %v1366 = vadd.f32 0.0, %v1365
        %v1367 = vpop.f32.mrb[0].mxu0
        %1368 = vmatprep.mubr.f32.mxu0 0.0
        %1369 = vmatmul.mubr.f32.gmra.mrb[0].mxu0 %v1297
        %v1370 = vpop.f32.mrb[0].mxu0
        %v1371 = vadd.f32 0.0, %v1370
        %v1372 = vpop.f32.mrb[0].mxu0
        %1373 = vdwg.mxu0
        %v1374 = vadd.f32 %v1280, %v1366
        %v1375 = vadd.f32 %v1285, %v1371
        %s1376 = scalar_lea.vmem %s7, 2
        %v1377 = vld [vmem:[%s1376] sm:$0x1]
        %v1379 = vlaneseq
        %v1380 = vshrl.u32 %v1379, 7
        %v1381 = vsub.s32 0, %v1380
        %v1382 = vrot.slane %v1377, %v1381
        %v1384 = vadd.f32 %v1374, %v1382
        %v1385 = vadd.f32 %v1375, %v1382
        %v1386 = vmax.f32 %v1384, 0.0
        %v1387 = vmax.f32 %v1385, 0.0
        %v1388 = vld [vmem:[%s8] sm:$0xff]
        %v1389 = vld [vmem:[%s8 + $0x8] sm:$0xff]
        %v1390 = vld [vmem:[%s8 + $0x10] sm:$0xff]
        %v1391 = vld [vmem:[%s8 + $0x18] sm:$0xff]
        %v1392 = vld [vmem:[%s9] sm:$0x1]
        %v1394 = vlaneseq
        %v1395 = vshrl.u32 %v1394, 7
        %v1396 = vsub.s32 0, %v1395
        %v1397 = vrot.slane %v1392, %v1396
        %v1400 = vsel %vm559, %v1386, 0
        %v1403 = vsel %vm559, %v1387, 0
        %1405 = vmatprep.subr.mxu0 0.0
        %1406 = vmatpush1.msra.mxu0 %v1388
        %1407 = vmatprep.subr.mxu0 0.0
        %1408 = vmatpush1.msra.mxu0 %v1389
        %1409 = vmatprep.subr.mxu0 0.0
        %1410 = vmatpush1.msra.mxu0 %v1390
        %1411 = vmatprep.subr.mxu0 0.0
        %1412 = vmatpush1.msra.mxu0 %v1391
        %1413 = vmatprep.subr.mxu0 0.0
        %1414 = vmatpush1.msra.mxu0 0.0
        %1415 = vmatprep.subr.mxu0 0.0
        %1416 = vmatpush1.msra.mxu0 0.0
        %1417 = vmatprep.subr.mxu0 0.0
        %1418 = vmatpush1.msra.mxu0 0.0
        %1419 = vmatprep.subr.mxu0 0.0
        %1420 = vmatpush1.msra.mxu0 0.0
        %1421 = vmatprep.subr.mxu0 0.0
        %1422 = vmatpush1.msra.mxu0 0.0
        %1423 = vmatprep.subr.mxu0 0.0
        %1424 = vmatpush1.msra.mxu0 0.0
        %1425 = vmatprep.subr.mxu0 0.0
        %1426 = vmatpush1.msra.mxu0 0.0
        %1427 = vmatprep.subr.mxu0 0.0
        %1428 = vmatpush1.msra.mxu0 0.0
        %1429 = vmatprep.subr.mxu0 0.0
        %1430 = vmatpush1.msra.mxu0 0.0
        %1431 = vmatprep.subr.mxu0 0.0
        %1432 = vmatpush1.msra.mxu0 0.0
        %1433 = vmatprep.subr.mxu0 0.0
        %1434 = vmatpush1.msra.mxu0 0.0
        %1435 = vmatprep.subr.mxu0 0.0
        %1436 = vmatpush1.msra.mxu0 0.0
        %1437 = vmatprep.subr.mxu0 0.0
        %1438 = vmatpush1.msra.mxu0 0.0
        %1439 = vmatprep.subr.mxu0 0.0
        %1440 = vmatpush1.msra.mxu0 0.0
        %1441 = vmatprep.subr.mxu0 0.0
        %1442 = vmatpush1.msra.mxu0 0.0
        %1443 = vmatprep.subr.mxu0 0.0
        %1444 = vmatpush1.msra.mxu0 0.0
        %1445 = vmatprep.subr.mxu0 0.0
        %1446 = vmatpush1.msra.mxu0 0.0
        %1447 = vmatprep.subr.mxu0 0.0
        %1448 = vmatpush1.msra.mxu0 0.0
        %1449 = vmatprep.subr.mxu0 0.0
        %1450 = vmatpush1.msra.mxu0 0.0
        %1451 = vmatprep.subr.mxu0 0.0
        %1452 = vmatpush1.msra.mxu0 0.0
        %1453 = vmatprep.subr.mxu0 0.0
        %1454 = vmatpush1.msra.mxu0 0.0
        %1455 = vmatprep.subr.mxu0 0.0
        %1456 = vmatpush1.msra.mxu0 0.0
        %1457 = vmatprep.subr.mxu0 0.0
        %1458 = vmatpush1.msra.mxu0 0.0
        %1459 = vmatprep.subr.mxu0 0.0
        %1460 = vmatpush1.msra.mxu0 0.0
        %1461 = vmatprep.subr.mxu0 0.0
        %1462 = vmatpush1.msra.mxu0 0.0
        %1463 = vmatprep.subr.mxu0 0.0
        %1464 = vmatpush1.msra.mxu0 0.0
        %1465 = vmatprep.subr.mxu0 0.0
        %1466 = vmatpush1.msra.mxu0 0.0
        %1467 = vmatprep.subr.mxu0 0.0
        %1468 = vmatpush1.msra.mxu0 0.0
        %1469 = vmatprep.mubr.f32.mxu0 0.0
        %1470 = vmatmul.mubr.f32.gmra.mrb[0].mxu0 %v1400
        %v1471 = vpop.f32.mrb[0].mxu0
        %v1472 = vadd.f32 %v1397, %v1471
        %v1473 = vpop.f32.mrb[0].mxu0
        %1474 = vmatprep.mubr.f32.mxu0 0.0
        %1475 = vmatmul.mubr.f32.gmra.mrb[0].mxu0 %v1403
        %v1476 = vpop.f32.mrb[0].mxu0
        %v1477 = vadd.f32 %v1397, %v1476
        %v1478 = vpop.f32.mrb[0].mxu0
        %1479 = vdwg.mxu0
        %1480 = vst [vmem:[%s412] sm:$0xff] %v1472
        %1481 = vst [vmem:[%s412 + $0x8] sm:$0xff] %v1477
        %s1482 = sand.u32 %s250, 1
        %s1483 = scalar_lea.sflag [#allocation4], %s1482
        %s1484 = sand.u32 %s250, 1
        %s1485 = smul.addr %s1484, 16
        %s1486 = scalar_lea.vmem [#allocation10], %s1485
        // Predicated region
        $region77: #{tpu_custom_call.1} parent=59 // pred_check
          %p1487 = pneg %p260
        $region78: #{tpu_custom_call.1} parent=59 // pred_check_branch
          %1489 = sbr.rel (%p1487) target = $region80
        $region79: #{tpu_custom_call.1} parent=59 // pred_region
          %s1490 = smul.u32 2, %s27
          %s1492 = ssub.s32 256, 256
          %1493 = vsyncadd %s1483, %s1492
          %s1494 = smul.addr %s1490, 128
          %s1495 = scalar_lea.hbm %s10, %s1494
          %s1496 = sshll.u32 %s1486, 4
          %s1497 = int_to_ptr.vmem [resolvable:$true] %s1496
          %1502 = dma.vmem_to_hbm [thread:$0]  %s1497, 256, %s1495, %s1483, 128, 128, 8
        $region80: #{tpu_custom_call.1} parent=59 // pred_fallthru
          _
      $region60: #{tpu_custom_call.1} parent=5 // pred_fallthru
        _
      %p1503 = scmp.le.s32.totalorder 2, %s22
      // Predicated region
      $region81: #{tpu_custom_call.1} parent=5 // pred_check
        %p1504 = pneg %p1503
      $region82: #{tpu_custom_call.1} parent=5 // pred_check_branch
        %1506 = sbr.rel (%p1504) target = $region84
      $region83: #{tpu_custom_call.1} parent=5 // pred_region
        %s1507 = ssub.s32 %s22, 2
        // Predicated region
        $region85: #{tpu_custom_call.1} parent=83 // pred_check
          %p1508 = pneg %p266
        $region86: #{tpu_custom_call.1} parent=83 // pred_check_branch
          %1510 = sbr.rel (%p1508) target = $region88
        $region87: #{tpu_custom_call.1} parent=83 // pred_region
          %s1511 = sand.u32 %s251, 1
          %s1512 = scalar_lea.sflag [#allocation4], %s1511
          %s1513 = sand.u32 %s251, 1
          %s1514 = smul.addr %s1513, 16
          %s1515 = scalar_lea.vmem [#allocation10], %s1514
          %1516 = dma.done %s1512, 256
        $region88: #{tpu_custom_call.1} parent=83 // pred_fallthru
          _
      $region84: #{tpu_custom_call.1} parent=5 // pred_fallthru
        _
    $region6: #{tpu_custom_call.1} parent=1 // loop_footer
      %s26 = sadd.s32 1, %s22
    $region7: #{tpu_custom_call.1} parent=1 // loop_footer_branch
      %21 = sbr.rel target = $region3
    $region8: #{tpu_custom_call.1} parent=1 // loop_exit
      _
    %1517 = vsyncpa [#allocation3], 1
    %s1518 = scalar_lea.sflag [#allocation3], 1
    %1519 = vsyncpa %s1518, 1
    %1520 = vsyncpa [#allocation6], 1
    %1521 = vsyncpa [#allocation9], 1
    %1522 = vsyncpa [#allocation4], 1
    %s1523 = scalar_lea.sflag [#allocation4], 1
    %1524 = vsyncpa %s1523, 1

</llo_original>
